<compile_context>
chip_gen: v7x
topology: tpu7x:2x2x1
jax: 0.10.0
libtpu: 0.0.40
codegen_flags: <defaults>
</compile_context>

<pallas_src>
import jax
import jax.numpy as jnp
from jax.experimental import pallas as pl
from jax.experimental.pallas import tpu as pltpu

_LANES = 128
_SOFTPLUS_THRESHOLD = 20.0        # torch.nn.Softplus default threshold (beta = 1)
_TINY_FAST_PATH_ELEMS = 65536     # below this, a fused XLA elementwise op wins
_MIN_SPLIT_BLOCK_BYTES = 1 << 20  # only split the grid if every block is >= 1 MiB
_MAX_BLOCK_BYTES = 4 << 20        # 4 MiB blocks; in+out double-buffered = 16 MiB
_VMEM_LIMIT_BYTES = 32 << 20      # safe on v5e/v6e/v7x


def _round_up(x, m):
    return ((x + m - 1) // m) * m


def _sublane_multiple(dtype):
    # f32 -> 8, bf16/f16 -> 16, int8/fp8 -> 32 (packed vreg sublane tiling).
    itemsize = jnp.dtype(dtype).itemsize
    return 8 * max(1, 4 // itemsize)


def _softplus_math_f32(xf):
    # softplus(x) = log1p(exp(x)), linear above the threshold (matches torch).
    return jnp.where(
        xf > _SOFTPLUS_THRESHOLD,
        xf,
        jnp.log1p(jnp.exp(jnp.minimum(xf, _SOFTPLUS_THRESHOLD))),
    )


def _softplus_jnp(x):
    """Plain-jnp path (tiny inputs and ragged tails)."""
    return _softplus_math_f32(x.astype(jnp.float32)).astype(x.dtype)


def _modified_softplus_kernel(x_ref, o_ref):
    xf = x_ref[...].astype(jnp.float32)
    o_ref[...] = _softplus_math_f32(xf).astype(o_ref.dtype)


def _run_pallas_2d(x2d):
    """Run the kernel on a lane-dense (rows, 128) slab."""
    rows, lanes = x2d.shape
    dtype = x2d.dtype
    itemsize = jnp.dtype(dtype).itemsize
    sub = _sublane_multiple(dtype)
    total_bytes = rows * lanes * itemsize

    if total_bytes < 4 * _MIN_SPLIT_BLOCK_BYTES:
        # Small/medium slab: one full-array block. No pointless serial steps on
        # single-TC chips (v5e/v6e); launch overhead is a single grid step.
        tile_rows = rows
    else:
        # Large slab: >= 4 blocks (>= 2 per TC on v7x for DMA/compute overlap),
        # each block up to _MAX_BLOCK_BYTES, rounded to the packed sublane tile.
        max_tile_rows = max(sub, _MAX_BLOCK_BYTES // (lanes * itemsize))
        num_blocks = max(4, pl.cdiv(rows, max_tile_rows))
        tile_rows = _round_up(pl.cdiv(rows, num_blocks), sub)

    grid = (pl.cdiv(rows, tile_rows),)

    return pl.pallas_call(
        _modified_softplus_kernel,
        out_shape=jax.ShapeDtypeStruct((rows, lanes), dtype),
        grid_spec=pltpu.PrefetchScalarGridSpec(
            num_scalar_prefetch=0,
            grid=grid,
            in_specs=[pl.BlockSpec((tile_rows, lanes), lambda i: (i, 0))],
            out_specs=pl.BlockSpec((tile_rows, lanes), lambda i: (i, 0)),
        ),
        compiler_params=pltpu.CompilerParams(
            dimension_semantics=("parallel",),
            vmem_limit_bytes=_VMEM_LIMIT_BYTES,
        ),
    )(x2d)


def modified_softplus(x, transform="identity"):
    """Pallas implementation of ModifiedSoftPlus.forward.

    x: any-shape float array (NCHW in the test). Returns array of same
    shape/dtype. transform: None or 'identity' (forward value is identical).
    """
    if transform not in (None, "identity"):
        raise ValueError(f"unsupported transform: {transform}")

    orig_shape = x.shape
    n = x.size

    # Tiny tensors: fixed pallas_call launch overhead dominates — plain jnp.
    if n < _TINY_FAST_PATH_ELEMS:
        return _softplus_jnp(x)

    flat = x.reshape(-1)
    rem = n % _LANES

    if rem == 0:
        # Common case: free reshape to a lane-dense slab, no extra HBM passes.
        out2d = _run_pallas_2d(flat.reshape(n // _LANES, _LANES))
        return out2d.reshape(orig_shape)

    # Ragged size: Pallas on the 128-aligned bulk, plain jnp on the <128-elem
    # tail (avoids the full-array jnp.pad + output slice passes).
    n_bulk = n - rem
    bulk_out = _run_pallas_2d(flat[:n_bulk].reshape(n_bulk // _LANES, _LANES))
    tail_out = _softplus_jnp(flat[n_bulk:])
    return jnp.concatenate([bulk_out.reshape(-1), tail_out]).reshape(orig_shape)


def _reference(x):
    """Pure-JAX reference for the forward value (== torch softplus forward)."""
    xf = x.astype(jnp.float32)
    return jnp.where(xf > _SOFTPLUS_THRESHOLD, xf, jax.nn.softplus(xf)).astype(x.dtype)


if __name__ == "__main__":
    key = jax.random.PRNGKey(0)
    k1, k2, k3, k4, k5 = jax.random.split(key, 5)

    # 1) Small NCHW input per the module spec (tiny fast path); include a value
    #    past the softplus linearization threshold.
    x_small = jax.random.normal(k1, (2, 4, 16, 16), dtype=jnp.float32) * 3.0
    x_small = x_small.at[0, 0, 0, 0].set(25.0)
    out_id = jax.block_until_ready(modified_softplus(x_small, transform="identity"))
    out_none = jax.block_until_ready(modified_softplus(x_small, transform=None))
    assert out_id.shape == x_small.shape and out_id.dtype == x_small.dtype
    assert jnp.allclose(out_id, _reference(x_small), atol=1e-5, rtol=1e-5)
    assert jnp.allclose(out_none, _reference(x_small), atol=1e-5, rtol=1e-5)

    # 2) Medium aligned f32 input -> Pallas single-block path.
    x_med = jax.random.normal(k2, (2, 4, 128, 128), dtype=jnp.float32) * 3.0
    x_med = x_med.at[0, 0, 0, 1].set(25.0)
    out_med = jax.block_until_ready(modified_softplus(x_med))
    assert out_med.shape == x_med.shape and out_med.dtype == x_med.dtype
    assert jnp.allclose(out_med, _reference(x_med), atol=1e-5, rtol=1e-5)

    # 3) Larger f32 input -> Pallas multi-block (>= 4 steps) path.
    x_big = jax.random.normal(k3, (2, 8, 256, 256), dtype=jnp.float32) * 3.0
    out_big = jax.block_until_ready(modified_softplus(x_big))
    assert jnp.allclose(out_big, _reference(x_big), atol=1e-5, rtol=1e-5)

    # 4) Ragged (non-128-multiple) size above the tiny threshold -> bulk + tail.
    x_rag = jax.random.normal(k4, (1, 3, 157, 157), dtype=jnp.float32) * 3.0
    out_rag = jax.block_until_ready(modified_softplus(x_rag))
    assert out_rag.shape == x_rag.shape
    assert jnp.allclose(out_rag, _reference(x_rag), atol=1e-5, rtol=1e-5)

    # 5) bf16 input -> Pallas path with 16-row sublane tiling, f32 internal math.
    x_bf16 = (jax.random.normal(k5, (2, 4, 128, 128), dtype=jnp.float32) * 3.0
              ).astype(jnp.bfloat16)
    out_bf16 = jax.block_until_ready(modified_softplus(x_bf16))
    assert out_bf16.dtype == jnp.bfloat16
    assert jnp.allclose(out_bf16.astype(jnp.float32),
                        _reference(x_bf16).astype(jnp.float32),
                        atol=5e-2, rtol=5e-2)

    # 6) Tiny awkward shape (fast path, ragged).
    y = jax.random.normal(jax.random.PRNGKey(1), (3, 5, 7), dtype=jnp.float32)
    out_y = jax.block_until_ready(modified_softplus(y))
    assert out_y.shape == y.shape
    assert jnp.allclose(out_y, _reference(y), atol=1e-5, rtol=1e-5)

    print("KERNEL_OK")
</pallas_src>

<mosaic_0001>
module attributes {stable_mosaic.version = 11 : i64} {
  func.func @_modified_softplus_kernel(%arg0: i32, %arg1: memref<1024x128xf32, #tpu.memory_space<vmem>>, %arg2: memref<1024x128xf32, #tpu.memory_space<vmem>>) attributes {dimension_semantics = [#tpu.dimension_semantics<parallel>], iteration_bounds = array<i64: 1>, scalar_prefetch = 0 : i64, scratch_operands = 0 : i64, tpu.core_type = #tpu.core_type<tc>, window_params = [{transform_indices = @transform_0, window_bounds = array<i64: 1024, 128>}, {transform_indices = @transform_1, window_bounds = array<i64: 1024, 128>}]} {
    %c0 = arith.constant 0 : index
    %c0_0 = arith.constant 0 : index
    %0 = vector.load %arg1[%c0, %c0_0] : memref<1024x128xf32, #tpu.memory_space<vmem>>, vector<1024x128xf32>
    %cst = arith.constant 2.000000e+01 : f32
    %1 = vector.broadcast %cst : f32 to vector<1024x128xf32>
    %2 = arith.cmpf ogt, %0, %1 : vector<1024x128xf32>
    %cst_1 = arith.constant 2.000000e+01 : f32
    %3 = vector.broadcast %cst_1 : f32 to vector<1024x128xf32>
    %4 = arith.minimumf %0, %3 : vector<1024x128xf32>
    %5 = math.exp %4 : vector<1024x128xf32>
    %6 = math.log1p %5 : vector<1024x128xf32>
    %7 = arith.select %2, %0, %6 : vector<1024x128xi1>, vector<1024x128xf32>
    %c0_2 = arith.constant 0 : index
    %c0_3 = arith.constant 0 : index
    %8 = vector.load %arg2[%c0_2, %c0_3] : memref<1024x128xf32, #tpu.memory_space<vmem>>, vector<1024x128xf32>
    tpu.vector_store %arg2[%c0_2, %c0_3], %7 {strides = array<i32>} : memref<1024x128xf32, #tpu.memory_space<vmem>>, vector<1024x128xf32>,
    return
  }
  func.func @transform_0(%arg0: i32) -> (i32, i32) {
    %c0_i32 = arith.constant 0 : i32
    %c0_i32_0 = arith.constant 0 : i32
    return %arg0, %c0_i32 : i32, i32
  }
  func.func @transform_1(%arg0: i32) -> (i32, i32) {
    %c0_i32 = arith.constant 0 : i32
    %c0_i32_0 = arith.constant 0 : i32
    return %arg0, %c0_i32 : i32, i32
  }
}

</mosaic_0001>

<llo_original>
// kernel: tpu_custom_call.1
$region0: #{tpu_custom_call.1}
  #allocation0 [shape = 'u32[]', space=smem, size = 0x4, offset = 0x4, fixed_abs, tag = 'smem constant byte address 0x4 - core index']
  #allocation1 [shape = 'u32[144,128]{1,0:T(1,128)}', space=vmem, size = 0x12000, scoped, tag = 'internal scratch']
  %s0 = inlined_call_operand.hbm [shape: f32[1024,128], index: 0, kind: input, shape index: {}]
  %s1 = inlined_call_operand.hbm [shape: f32[1024,128], index: 1, kind: output, shape index: {}]
  %s2 = sld [smem:[#allocation0]]
  $region18: #{tpu_custom_call.1} parent=0
    _
  %s4 = ssub.s32 1, %s2
  %s5 = scalar_select 0, %s4, %s2
  $region1: #{tpu_custom_call.1} parent=0
    #allocation2 [shape = 'u8[524288]{0}', space=vmem, size = 0x80000, scoped, tag = 'input window, operand 0, single buffered']
    #allocation3 [shape = 's32[1]{0}', space=sflag, size = 0x4, scoped, tag = 'scoped memory for tpu_custom_call.1']
    #allocation4 [shape = 's32[1]{0}', space=sflag, size = 0x4, scoped, tag = 'scoped memory for tpu_custom_call.1']
    #allocation5 [shape = 'u8[524288]{0}', space=vmem, size = 0x80000, scoped, tag = 'output window, operand 0, single buffered']
    %6 = vsyncpa [#allocation3], 0
    %7 = vsyncpa [#allocation4], 0
    // Predicated region
    $region2: #{tpu_custom_call.1} parent=1 // pred_check
      _
    $region3: #{tpu_custom_call.1} parent=1 // pred_check_branch
      %9 = sbr.rel (0) target = $region5
    $region4: #{tpu_custom_call.1} parent=1 // pred_region
      %s11 = ssub.s32 16384, 16384
      %12 = vsyncadd [#allocation3], %s11
      %s13 = sshll.u32 [#allocation2], 4
      %s14 = int_to_ptr.vmem [resolvable:$true] %s13
      %19 = dma.hbm_to_vmem [thread:$0]  %s0, 16384, %s14, [#allocation3], 128, 128, 8
    $region5: #{tpu_custom_call.1} parent=1 // pred_fallthru
      _
    // Predicated region
    $region6: #{tpu_custom_call.1} parent=1 // pred_check
      _
    $region7: #{tpu_custom_call.1} parent=1 // pred_check_branch
      %21 = sbr.rel (0) target = $region9
    $region8: #{tpu_custom_call.1} parent=1 // pred_region
      %22 = dma.done [#allocation3], 16384
    $region9: #{tpu_custom_call.1} parent=1 // pred_fallthru
      _
    %v23 = vld [vmem:[#allocation2] sm:$0xff]
    %v24 = vld [vmem:[#allocation2 + $0x8] sm:$0xff]
    %v25 = vld [vmem:[#allocation2 + $0x10] sm:$0xff]
    %v26 = vld [vmem:[#allocation2 + $0x18] sm:$0xff]
    %v27 = vld [vmem:[#allocation2 + $0x20] sm:$0xff]
    %v28 = vld [vmem:[#allocation2 + $0x28] sm:$0xff]
    %v29 = vld [vmem:[#allocation2 + $0x30] sm:$0xff]
    %v30 = vld [vmem:[#allocation2 + $0x38] sm:$0xff]
    %v31 = vld [vmem:[#allocation2 + $0x40] sm:$0xff]
    %v32 = vld [vmem:[#allocation2 + $0x48] sm:$0xff]
    %v33 = vld [vmem:[#allocation2 + $0x50] sm:$0xff]
    %v34 = vld [vmem:[#allocation2 + $0x58] sm:$0xff]
    %v35 = vld [vmem:[#allocation2 + $0x60] sm:$0xff]
    %v36 = vld [vmem:[#allocation2 + $0x68] sm:$0xff]
    %v37 = vld [vmem:[#allocation2 + $0x70] sm:$0xff]
    %v38 = vld [vmem:[#allocation2 + $0x78] sm:$0xff]
    %v39 = vld [vmem:[#allocation2 + $0x80] sm:$0xff]
    %v40 = vld [vmem:[#allocation2 + $0x88] sm:$0xff]
    %v41 = vld [vmem:[#allocation2 + $0x90] sm:$0xff]
    %v42 = vld [vmem:[#allocation2 + $0x98] sm:$0xff]
    %v43 = vld [vmem:[#allocation2 + $0xa0] sm:$0xff]
    %v44 = vld [vmem:[#allocation2 + $0xa8] sm:$0xff]
    %v45 = vld [vmem:[#allocation2 + $0xb0] sm:$0xff]
    %v46 = vld [vmem:[#allocation2 + $0xb8] sm:$0xff]
    %v47 = vld [vmem:[#allocation2 + $0xc0] sm:$0xff]
    %v48 = vld [vmem:[#allocation2 + $0xc8] sm:$0xff]
    %v49 = vld [vmem:[#allocation2 + $0xd0] sm:$0xff]
    %v50 = vld [vmem:[#allocation2 + $0xd8] sm:$0xff]
    %v51 = vld [vmem:[#allocation2 + $0xe0] sm:$0xff]
    %v52 = vld [vmem:[#allocation2 + $0xe8] sm:$0xff]
    %v53 = vld [vmem:[#allocation2 + $0xf0] sm:$0xff]
    %v54 = vld [vmem:[#allocation2 + $0xf8] sm:$0xff]
    %v55 = vld [vmem:[#allocation2 + $0x100] sm:$0xff]
    %v56 = vld [vmem:[#allocation2 + $0x108] sm:$0xff]
    %v57 = vld [vmem:[#allocation2 + $0x110] sm:$0xff]
    %v58 = vld [vmem:[#allocation2 + $0x118] sm:$0xff]
    %v59 = vld [vmem:[#allocation2 + $0x120] sm:$0xff]
    %v60 = vld [vmem:[#allocation2 + $0x128] sm:$0xff]
    %v61 = vld [vmem:[#allocation2 + $0x130] sm:$0xff]
    %v62 = vld [vmem:[#allocation2 + $0x138] sm:$0xff]
    %v63 = vld [vmem:[#allocation2 + $0x140] sm:$0xff]
    %v64 = vld [vmem:[#allocation2 + $0x148] sm:$0xff]
    %v65 = vld [vmem:[#allocation2 + $0x150] sm:$0xff]
    %v66 = vld [vmem:[#allocation2 + $0x158] sm:$0xff]
    %v67 = vld [vmem:[#allocation2 + $0x160] sm:$0xff]
    %v68 = vld [vmem:[#allocation2 + $0x168] sm:$0xff]
    %v69 = vld [vmem:[#allocation2 + $0x170] sm:$0xff]
    %v70 = vld [vmem:[#allocation2 + $0x178] sm:$0xff]
    %v71 = vld [vmem:[#allocation2 + $0x180] sm:$0xff]
    %v72 = vld [vmem:[#allocation2 + $0x188] sm:$0xff]
    %v73 = vld [vmem:[#allocation2 + $0x190] sm:$0xff]
    %v74 = vld [vmem:[#allocation2 + $0x198] sm:$0xff]
    %v75 = vld [vmem:[#allocation2 + $0x1a0] sm:$0xff]
    %v76 = vld [vmem:[#allocation2 + $0x1a8] sm:$0xff]
    %v77 = vld [vmem:[#allocation2 + $0x1b0] sm:$0xff]
    %v78 = vld [vmem:[#allocation2 + $0x1b8] sm:$0xff]
    %v79 = vld [vmem:[#allocation2 + $0x1c0] sm:$0xff]
    %v80 = vld [vmem:[#allocation2 + $0x1c8] sm:$0xff]
    %v81 = vld [vmem:[#allocation2 + $0x1d0] sm:$0xff]
    %v82 = vld [vmem:[#allocation2 + $0x1d8] sm:$0xff]
    %v83 = vld [vmem:[#allocation2 + $0x1e0] sm:$0xff]
    %v84 = vld [vmem:[#allocation2 + $0x1e8] sm:$0xff]
    %v85 = vld [vmem:[#allocation2 + $0x1f0] sm:$0xff]
    %v86 = vld [vmem:[#allocation2 + $0x1f8] sm:$0xff]
    %v87 = vld [vmem:[#allocation2 + $0x200] sm:$0xff]
    %v88 = vld [vmem:[#allocation2 + $0x208] sm:$0xff]
    %v89 = vld [vmem:[#allocation2 + $0x210] sm:$0xff]
    %v90 = vld [vmem:[#allocation2 + $0x218] sm:$0xff]
    %v91 = vld [vmem:[#allocation2 + $0x220] sm:$0xff]
    %v92 = vld [vmem:[#allocation2 + $0x228] sm:$0xff]
    %v93 = vld [vmem:[#allocation2 + $0x230] sm:$0xff]
    %v94 = vld [vmem:[#allocation2 + $0x238] sm:$0xff]
    %v95 = vld [vmem:[#allocation2 + $0x240] sm:$0xff]
    %v96 = vld [vmem:[#allocation2 + $0x248] sm:$0xff]
    %v97 = vld [vmem:[#allocation2 + $0x250] sm:$0xff]
    %v98 = vld [vmem:[#allocation2 + $0x258] sm:$0xff]
    %v99 = vld [vmem:[#allocation2 + $0x260] sm:$0xff]
    %v100 = vld [vmem:[#allocation2 + $0x268] sm:$0xff]
    %v101 = vld [vmem:[#allocation2 + $0x270] sm:$0xff]
    %v102 = vld [vmem:[#allocation2 + $0x278] sm:$0xff]
    %v103 = vld [vmem:[#allocation2 + $0x280] sm:$0xff]
    %v104 = vld [vmem:[#allocation2 + $0x288] sm:$0xff]
    %v105 = vld [vmem:[#allocation2 + $0x290] sm:$0xff]
    %v106 = vld [vmem:[#allocation2 + $0x298] sm:$0xff]
    %v107 = vld [vmem:[#allocation2 + $0x2a0] sm:$0xff]
    %v108 = vld [vmem:[#allocation2 + $0x2a8] sm:$0xff]
    %v109 = vld [vmem:[#allocation2 + $0x2b0] sm:$0xff]
    %v110 = vld [vmem:[#allocation2 + $0x2b8] sm:$0xff]
    %v111 = vld [vmem:[#allocation2 + $0x2c0] sm:$0xff]
    %v112 = vld [vmem:[#allocation2 + $0x2c8] sm:$0xff]
    %v113 = vld [vmem:[#allocation2 + $0x2d0] sm:$0xff]
    %v114 = vld [vmem:[#allocation2 + $0x2d8] sm:$0xff]
    %v115 = vld [vmem:[#allocation2 + $0x2e0] sm:$0xff]
    %v116 = vld [vmem:[#allocation2 + $0x2e8] sm:$0xff]
    %v117 = vld [vmem:[#allocation2 + $0x2f0] sm:$0xff]
    %v118 = vld [vmem:[#allocation2 + $0x2f8] sm:$0xff]
    %v119 = vld [vmem:[#allocation2 + $0x300] sm:$0xff]
    %v120 = vld [vmem:[#allocation2 + $0x308] sm:$0xff]
    %v121 = vld [vmem:[#allocation2 + $0x310] sm:$0xff]
    %v122 = vld [vmem:[#allocation2 + $0x318] sm:$0xff]
    %v123 = vld [vmem:[#allocation2 + $0x320] sm:$0xff]
    %v124 = vld [vmem:[#allocation2 + $0x328] sm:$0xff]
    %v125 = vld [vmem:[#allocation2 + $0x330] sm:$0xff]
    %v126 = vld [vmem:[#allocation2 + $0x338] sm:$0xff]
    %v127 = vld [vmem:[#allocation2 + $0x340] sm:$0xff]
    %v128 = vld [vmem:[#allocation2 + $0x348] sm:$0xff]
    %v129 = vld [vmem:[#allocation2 + $0x350] sm:$0xff]
    %v130 = vld [vmem:[#allocation2 + $0x358] sm:$0xff]
    %v131 = vld [vmem:[#allocation2 + $0x360] sm:$0xff]
    %v132 = vld [vmem:[#allocation2 + $0x368] sm:$0xff]
    %v133 = vld [vmem:[#allocation2 + $0x370] sm:$0xff]
    %v134 = vld [vmem:[#allocation2 + $0x378] sm:$0xff]
    %v135 = vld [vmem:[#allocation2 + $0x380] sm:$0xff]
    %v136 = vld [vmem:[#allocation2 + $0x388] sm:$0xff]
    %v137 = vld [vmem:[#allocation2 + $0x390] sm:$0xff]
    %v138 = vld [vmem:[#allocation2 + $0x398] sm:$0xff]
    %v139 = vld [vmem:[#allocation2 + $0x3a0] sm:$0xff]
    %v140 = vld [vmem:[#allocation2 + $0x3a8] sm:$0xff]
    %v141 = vld [vmem:[#allocation2 + $0x3b0] sm:$0xff]
    %v142 = vld [vmem:[#allocation2 + $0x3b8] sm:$0xff]
    %v143 = vld [vmem:[#allocation2 + $0x3c0] sm:$0xff]
    %v144 = vld [vmem:[#allocation2 + $0x3c8] sm:$0xff]
    %v145 = vld [vmem:[#allocation2 + $0x3d0] sm:$0xff]
    %v146 = vld [vmem:[#allocation2 + $0x3d8] sm:$0xff]
    %v147 = vld [vmem:[#allocation2 + $0x3e0] sm:$0xff]
    %v148 = vld [vmem:[#allocation2 + $0x3e8] sm:$0xff]
    %v149 = vld [vmem:[#allocation2 + $0x3f0] sm:$0xff]
    %v150 = vld [vmem:[#allocation2 + $0x3f8] sm:$0xff]
    %vm151 = vcmp.gt.f32.partialorder %v23, 20.0
    %vm152 = vcmp.gt.f32.partialorder %v24, 20.0
    %vm153 = vcmp.gt.f32.partialorder %v25, 20.0
    %vm154 = vcmp.gt.f32.partialorder %v26, 20.0
    %vm155 = vcmp.gt.f32.partialorder %v27, 20.0
    %vm156 = vcmp.gt.f32.partialorder %v28, 20.0
    %vm157 = vcmp.gt.f32.partialorder %v29, 20.0
    %vm158 = vcmp.gt.f32.partialorder %v30, 20.0
    %vm159 = vcmp.gt.f32.partialorder %v31, 20.0
    %vm160 = vcmp.gt.f32.partialorder %v32, 20.0
    %vm161 = vcmp.gt.f32.partialorder %v33, 20.0
    %vm162 = vcmp.gt.f32.partialorder %v34, 20.0
    %vm163 = vcmp.gt.f32.partialorder %v35, 20.0
    %vm164 = vcmp.gt.f32.partialorder %v36, 20.0
    %vm165 = vcmp.gt.f32.partialorder %v37, 20.0
    %vm166 = vcmp.gt.f32.partialorder %v38, 20.0
    %vm167 = vcmp.gt.f32.partialorder %v39, 20.0
    %vm168 = vcmp.gt.f32.partialorder %v40, 20.0
    %vm169 = vcmp.gt.f32.partialorder %v41, 20.0
    %vm170 = vcmp.gt.f32.partialorder %v42, 20.0
    %vm171 = vcmp.gt.f32.partialorder %v43, 20.0
    %vm172 = vcmp.gt.f32.partialorder %v44, 20.0
    %vm173 = vcmp.gt.f32.partialorder %v45, 20.0
    %vm174 = vcmp.gt.f32.partialorder %v46, 20.0
    %vm175 = vcmp.gt.f32.partialorder %v47, 20.0
    %vm176 = vcmp.gt.f32.partialorder %v48, 20.0
    %vm177 = vcmp.gt.f32.partialorder %v49, 20.0
    %vm178 = vcmp.gt.f32.partialorder %v50, 20.0
    %vm179 = vcmp.gt.f32.partialorder %v51, 20.0
    %vm180 = vcmp.gt.f32.partialorder %v52, 20.0
    %vm181 = vcmp.gt.f32.partialorder %v53, 20.0
    %vm182 = vcmp.gt.f32.partialorder %v54, 20.0
    %vm183 = vcmp.gt.f32.partialorder %v55, 20.0
    %vm184 = vcmp.gt.f32.partialorder %v56, 20.0
    %vm185 = vcmp.gt.f32.partialorder %v57, 20.0
    %vm186 = vcmp.gt.f32.partialorder %v58, 20.0
    %vm187 = vcmp.gt.f32.partialorder %v59, 20.0
    %vm188 = vcmp.gt.f32.partialorder %v60, 20.0
    %vm189 = vcmp.gt.f32.partialorder %v61, 20.0
    %vm190 = vcmp.gt.f32.partialorder %v62, 20.0
    %vm191 = vcmp.gt.f32.partialorder %v63, 20.0
    %vm192 = vcmp.gt.f32.partialorder %v64, 20.0
    %vm193 = vcmp.gt.f32.partialorder %v65, 20.0
    %vm194 = vcmp.gt.f32.partialorder %v66, 20.0
    %vm195 = vcmp.gt.f32.partialorder %v67, 20.0
    %vm196 = vcmp.gt.f32.partialorder %v68, 20.0
    %vm197 = vcmp.gt.f32.partialorder %v69, 20.0
    %vm198 = vcmp.gt.f32.partialorder %v70, 20.0
    %vm199 = vcmp.gt.f32.partialorder %v71, 20.0
    %vm200 = vcmp.gt.f32.partialorder %v72, 20.0
    %vm201 = vcmp.gt.f32.partialorder %v73, 20.0
    %vm202 = vcmp.gt.f32.partialorder %v74, 20.0
    %vm203 = vcmp.gt.f32.partialorder %v75, 20.0
    %vm204 = vcmp.gt.f32.partialorder %v76, 20.0
    %vm205 = vcmp.gt.f32.partialorder %v77, 20.0
    %vm206 = vcmp.gt.f32.partialorder %v78, 20.0
    %vm207 = vcmp.gt.f32.partialorder %v79, 20.0
    %vm208 = vcmp.gt.f32.partialorder %v80, 20.0
    %vm209 = vcmp.gt.f32.partialorder %v81, 20.0
    %vm210 = vcmp.gt.f32.partialorder %v82, 20.0
    %vm211 = vcmp.gt.f32.partialorder %v83, 20.0
    %vm212 = vcmp.gt.f32.partialorder %v84, 20.0
    %vm213 = vcmp.gt.f32.partialorder %v85, 20.0
    %vm214 = vcmp.gt.f32.partialorder %v86, 20.0
    %vm215 = vcmp.gt.f32.partialorder %v87, 20.0
    %vm216 = vcmp.gt.f32.partialorder %v88, 20.0
    %vm217 = vcmp.gt.f32.partialorder %v89, 20.0
    %vm218 = vcmp.gt.f32.partialorder %v90, 20.0
    %vm219 = vcmp.gt.f32.partialorder %v91, 20.0
    %vm220 = vcmp.gt.f32.partialorder %v92, 20.0
    %vm221 = vcmp.gt.f32.partialorder %v93, 20.0
    %vm222 = vcmp.gt.f32.partialorder %v94, 20.0
    %vm223 = vcmp.gt.f32.partialorder %v95, 20.0
    %vm224 = vcmp.gt.f32.partialorder %v96, 20.0
    %vm225 = vcmp.gt.f32.partialorder %v97, 20.0
    %vm226 = vcmp.gt.f32.partialorder %v98, 20.0
    %vm227 = vcmp.gt.f32.partialorder %v99, 20.0
    %vm228 = vcmp.gt.f32.partialorder %v100, 20.0
    %vm229 = vcmp.gt.f32.partialorder %v101, 20.0
    %vm230 = vcmp.gt.f32.partialorder %v102, 20.0
    %vm231 = vcmp.gt.f32.partialorder %v103, 20.0
    %vm232 = vcmp.gt.f32.partialorder %v104, 20.0
    %vm233 = vcmp.gt.f32.partialorder %v105, 20.0
    %vm234 = vcmp.gt.f32.partialorder %v106, 20.0
    %vm235 = vcmp.gt.f32.partialorder %v107, 20.0
    %vm236 = vcmp.gt.f32.partialorder %v108, 20.0
    %vm237 = vcmp.gt.f32.partialorder %v109, 20.0
    %vm238 = vcmp.gt.f32.partialorder %v110, 20.0
    %vm239 = vcmp.gt.f32.partialorder %v111, 20.0
    %vm240 = vcmp.gt.f32.partialorder %v112, 20.0
    %vm241 = vcmp.gt.f32.partialorder %v113, 20.0
    %vm242 = vcmp.gt.f32.partialorder %v114, 20.0
    %vm243 = vcmp.gt.f32.partialorder %v115, 20.0
    %vm244 = vcmp.gt.f32.partialorder %v116, 20.0
    %vm245 = vcmp.gt.f32.partialorder %v117, 20.0
    %vm246 = vcmp.gt.f32.partialorder %v118, 20.0
    %vm247 = vcmp.gt.f32.partialorder %v119, 20.0
    %vm248 = vcmp.gt.f32.partialorder %v120, 20.0
    %vm249 = vcmp.gt.f32.partialorder %v121, 20.0
    %vm250 = vcmp.gt.f32.partialorder %v122, 20.0
    %vm251 = vcmp.gt.f32.partialorder %v123, 20.0
    %vm252 = vcmp.gt.f32.partialorder %v124, 20.0
    %vm253 = vcmp.gt.f32.partialorder %v125, 20.0
    %vm254 = vcmp.gt.f32.partialorder %v126, 20.0
    %vm255 = vcmp.gt.f32.partialorder %v127, 20.0
    %vm256 = vcmp.gt.f32.partialorder %v128, 20.0
    %vm257 = vcmp.gt.f32.partialorder %v129, 20.0
    %vm258 = vcmp.gt.f32.partialorder %v130, 20.0
    %vm259 = vcmp.gt.f32.partialorder %v131, 20.0
    %vm260 = vcmp.gt.f32.partialorder %v132, 20.0
    %vm261 = vcmp.gt.f32.partialorder %v133, 20.0
    %vm262 = vcmp.gt.f32.partialorder %v134, 20.0
    %vm263 = vcmp.gt.f32.partialorder %v135, 20.0
    %vm264 = vcmp.gt.f32.partialorder %v136, 20.0
    %vm265 = vcmp.gt.f32.partialorder %v137, 20.0
    %vm266 = vcmp.gt.f32.partialorder %v138, 20.0
    %vm267 = vcmp.gt.f32.partialorder %v139, 20.0
    %vm268 = vcmp.gt.f32.partialorder %v140, 20.0
    %vm269 = vcmp.gt.f32.partialorder %v141, 20.0
    %vm270 = vcmp.gt.f32.partialorder %v142, 20.0
    %vm271 = vcmp.gt.f32.partialorder %v143, 20.0
    %vm272 = vcmp.gt.f32.partialorder %v144, 20.0
    %vm273 = vcmp.gt.f32.partialorder %v145, 20.0
    %vm274 = vcmp.gt.f32.partialorder %v146, 20.0
    %vm275 = vcmp.gt.f32.partialorder %v147, 20.0
    %vm276 = vcmp.gt.f32.partialorder %v148, 20.0
    %vm277 = vcmp.gt.f32.partialorder %v149, 20.0
    %vm278 = vcmp.gt.f32.partialorder %v150, 20.0
    %v279 = vmin.f32 %v23, 20.0
    %v280 = vmin.f32 %v24, 20.0
    %v281 = vmin.f32 %v25, 20.0
    %v282 = vmin.f32 %v26, 20.0
    %v283 = vmin.f32 %v27, 20.0
    %v284 = vmin.f32 %v28, 20.0
    %v285 = vmin.f32 %v29, 20.0
    %v286 = vmin.f32 %v30, 20.0
    %v287 = vmin.f32 %v31, 20.0
    %v288 = vmin.f32 %v32, 20.0
    %v289 = vmin.f32 %v33, 20.0
    %v290 = vmin.f32 %v34, 20.0
    %v291 = vmin.f32 %v35, 20.0
    %v292 = vmin.f32 %v36, 20.0
    %v293 = vmin.f32 %v37, 20.0
    %v294 = vmin.f32 %v38, 20.0
    %v295 = vmin.f32 %v39, 20.0
    %v296 = vmin.f32 %v40, 20.0
    %v297 = vmin.f32 %v41, 20.0
    %v298 = vmin.f32 %v42, 20.0
    %v299 = vmin.f32 %v43, 20.0
    %v300 = vmin.f32 %v44, 20.0
    %v301 = vmin.f32 %v45, 20.0
    %v302 = vmin.f32 %v46, 20.0
    %v303 = vmin.f32 %v47, 20.0
    %v304 = vmin.f32 %v48, 20.0
    %v305 = vmin.f32 %v49, 20.0
    %v306 = vmin.f32 %v50, 20.0
    %v307 = vmin.f32 %v51, 20.0
    %v308 = vmin.f32 %v52, 20.0
    %v309 = vmin.f32 %v53, 20.0
    %v310 = vmin.f32 %v54, 20.0
    %v311 = vmin.f32 %v55, 20.0
    %v312 = vmin.f32 %v56, 20.0
    %v313 = vmin.f32 %v57, 20.0
    %v314 = vmin.f32 %v58, 20.0
    %v315 = vmin.f32 %v59, 20.0
    %v316 = vmin.f32 %v60, 20.0
    %v317 = vmin.f32 %v61, 20.0
    %v318 = vmin.f32 %v62, 20.0
    %v319 = vmin.f32 %v63, 20.0
    %v320 = vmin.f32 %v64, 20.0
    %v321 = vmin.f32 %v65, 20.0
    %v322 = vmin.f32 %v66, 20.0
    %v323 = vmin.f32 %v67, 20.0
    %v324 = vmin.f32 %v68, 20.0
    %v325 = vmin.f32 %v69, 20.0
    %v326 = vmin.f32 %v70, 20.0
    %v327 = vmin.f32 %v71, 20.0
    %v328 = vmin.f32 %v72, 20.0
    %v329 = vmin.f32 %v73, 20.0
    %v330 = vmin.f32 %v74, 20.0
    %v331 = vmin.f32 %v75, 20.0
    %v332 = vmin.f32 %v76, 20.0
    %v333 = vmin.f32 %v77, 20.0
    %v334 = vmin.f32 %v78, 20.0
    %v335 = vmin.f32 %v79, 20.0
    %v336 = vmin.f32 %v80, 20.0
    %v337 = vmin.f32 %v81, 20.0
    %v338 = vmin.f32 %v82, 20.0
    %v339 = vmin.f32 %v83, 20.0
    %v340 = vmin.f32 %v84, 20.0
    %v341 = vmin.f32 %v85, 20.0
    %v342 = vmin.f32 %v86, 20.0
    %v343 = vmin.f32 %v87, 20.0
    %v344 = vmin.f32 %v88, 20.0
    %v345 = vmin.f32 %v89, 20.0
    %v346 = vmin.f32 %v90, 20.0
    %v347 = vmin.f32 %v91, 20.0
    %v348 = vmin.f32 %v92, 20.0
    %v349 = vmin.f32 %v93, 20.0
    %v350 = vmin.f32 %v94, 20.0
    %v351 = vmin.f32 %v95, 20.0
    %v352 = vmin.f32 %v96, 20.0
    %v353 = vmin.f32 %v97, 20.0
    %v354 = vmin.f32 %v98, 20.0
    %v355 = vmin.f32 %v99, 20.0
    %v356 = vmin.f32 %v100, 20.0
    %v357 = vmin.f32 %v101, 20.0
    %v358 = vmin.f32 %v102, 20.0
    %v359 = vmin.f32 %v103, 20.0
    %v360 = vmin.f32 %v104, 20.0
    %v361 = vmin.f32 %v105, 20.0
    %v362 = vmin.f32 %v106, 20.0
    %v363 = vmin.f32 %v107, 20.0
    %v364 = vmin.f32 %v108, 20.0
    %v365 = vmin.f32 %v109, 20.0
    %v366 = vmin.f32 %v110, 20.0
    %v367 = vmin.f32 %v111, 20.0
    %v368 = vmin.f32 %v112, 20.0
    %v369 = vmin.f32 %v113, 20.0
    %v370 = vmin.f32 %v114, 20.0
    %v371 = vmin.f32 %v115, 20.0
    %v372 = vmin.f32 %v116, 20.0
    %v373 = vmin.f32 %v117, 20.0
    %v374 = vmin.f32 %v118, 20.0
    %v375 = vmin.f32 %v119, 20.0
    %v376 = vmin.f32 %v120, 20.0
    %v377 = vmin.f32 %v121, 20.0
    %v378 = vmin.f32 %v122, 20.0
    %v379 = vmin.f32 %v123, 20.0
    %v380 = vmin.f32 %v124, 20.0
    %v381 = vmin.f32 %v125, 20.0
    %v382 = vmin.f32 %v126, 20.0
    %v383 = vmin.f32 %v127, 20.0
    %v384 = vmin.f32 %v128, 20.0
    %v385 = vmin.f32 %v129, 20.0
    %v386 = vmin.f32 %v130, 20.0
    %v387 = vmin.f32 %v131, 20.0
    %v388 = vmin.f32 %v132, 20.0
    %v389 = vmin.f32 %v133, 20.0
    %v390 = vmin.f32 %v134, 20.0
    %v391 = vmin.f32 %v135, 20.0
    %v392 = vmin.f32 %v136, 20.0
    %v393 = vmin.f32 %v137, 20.0
    %v394 = vmin.f32 %v138, 20.0
    %v395 = vmin.f32 %v139, 20.0
    %v396 = vmin.f32 %v140, 20.0
    %v397 = vmin.f32 %v141, 20.0
    %v398 = vmin.f32 %v142, 20.0
    %v399 = vmin.f32 %v143, 20.0
    %v400 = vmin.f32 %v144, 20.0
    %v401 = vmin.f32 %v145, 20.0
    %v402 = vmin.f32 %v146, 20.0
    %v403 = vmin.f32 %v147, 20.0
    %v404 = vmin.f32 %v148, 20.0
    %v405 = vmin.f32 %v149, 20.0
    %v406 = vmin.f32 %v150, 20.0
    %v407 = vmul.f32 %v279, 1.442695
    %v408 = vpow.pop %v407
    %v409 = vmul.f32 %v280, 1.442695
    %v410 = vpow.pop %v409
    %v411 = vmul.f32 %v281, 1.442695
    %v412 = vpow.pop %v411
    %v413 = vmul.f32 %v282, 1.442695
    %v414 = vpow.pop %v413
    %v415 = vmul.f32 %v283, 1.442695
    %v416 = vpow.pop %v415
    %v417 = vmul.f32 %v284, 1.442695
    %v418 = vpow.pop %v417
    %v419 = vmul.f32 %v285, 1.442695
    %v420 = vpow.pop %v419
    %v421 = vmul.f32 %v286, 1.442695
    %v422 = vpow.pop %v421
    %v423 = vmul.f32 %v287, 1.442695
    %v424 = vpow.pop %v423
    %v425 = vmul.f32 %v288, 1.442695
    %v426 = vpow.pop %v425
    %v427 = vmul.f32 %v289, 1.442695
    %v428 = vpow.pop %v427
    %v429 = vmul.f32 %v290, 1.442695
    %v430 = vpow.pop %v429
    %v431 = vmul.f32 %v291, 1.442695
    %v432 = vpow.pop %v431
    %v433 = vmul.f32 %v292, 1.442695
    %v434 = vpow.pop %v433
    %v435 = vmul.f32 %v293, 1.442695
    %v436 = vpow.pop %v435
    %v437 = vmul.f32 %v294, 1.442695
    %v438 = vpow.pop %v437
    %v439 = vmul.f32 %v295, 1.442695
    %v440 = vpow.pop %v439
    %v441 = vmul.f32 %v296, 1.442695
    %v442 = vpow.pop %v441
    %v443 = vmul.f32 %v297, 1.442695
    %v444 = vpow.pop %v443
    %v445 = vmul.f32 %v298, 1.442695
    %v446 = vpow.pop %v445
    %v447 = vmul.f32 %v299, 1.442695
    %v448 = vpow.pop %v447
    %v449 = vmul.f32 %v300, 1.442695
    %v450 = vpow.pop %v449
    %v451 = vmul.f32 %v301, 1.442695
    %v452 = vpow.pop %v451
    %v453 = vmul.f32 %v302, 1.442695
    %v454 = vpow.pop %v453
    %v455 = vmul.f32 %v303, 1.442695
    %v456 = vpow.pop %v455
    %v457 = vmul.f32 %v304, 1.442695
    %v458 = vpow.pop %v457
    %v459 = vmul.f32 %v305, 1.442695
    %v460 = vpow.pop %v459
    %v461 = vmul.f32 %v306, 1.442695
    %v462 = vpow.pop %v461
    %v463 = vmul.f32 %v307, 1.442695
    %v464 = vpow.pop %v463
    %v465 = vmul.f32 %v308, 1.442695
    %v466 = vpow.pop %v465
    %v467 = vmul.f32 %v309, 1.442695
    %v468 = vpow.pop %v467
    %v469 = vmul.f32 %v310, 1.442695
    %v470 = vpow.pop %v469
    %v471 = vmul.f32 %v311, 1.442695
    %v472 = vpow.pop %v471
    %v473 = vmul.f32 %v312, 1.442695
    %v474 = vpow.pop %v473
    %v475 = vmul.f32 %v313, 1.442695
    %v476 = vpow.pop %v475
    %v477 = vmul.f32 %v314, 1.442695
    %v478 = vpow.pop %v477
    %v479 = vmul.f32 %v315, 1.442695
    %v480 = vpow.pop %v479
    %v481 = vmul.f32 %v316, 1.442695
    %v482 = vpow.pop %v481
    %v483 = vmul.f32 %v317, 1.442695
    %v484 = vpow.pop %v483
    %v485 = vmul.f32 %v318, 1.442695
    %v486 = vpow.pop %v485
    %v487 = vmul.f32 %v319, 1.442695
    %v488 = vpow.pop %v487
    %v489 = vmul.f32 %v320, 1.442695
    %v490 = vpow.pop %v489
    %v491 = vmul.f32 %v321, 1.442695
    %v492 = vpow.pop %v491
    %v493 = vmul.f32 %v322, 1.442695
    %v494 = vpow.pop %v493
    %v495 = vmul.f32 %v323, 1.442695
    %v496 = vpow.pop %v495
    %v497 = vmul.f32 %v324, 1.442695
    %v498 = vpow.pop %v497
    %v499 = vmul.f32 %v325, 1.442695
    %v500 = vpow.pop %v499
    %v501 = vmul.f32 %v326, 1.442695
    %v502 = vpow.pop %v501
    %v503 = vmul.f32 %v327, 1.442695
    %v504 = vpow.pop %v503
    %v505 = vmul.f32 %v328, 1.442695
    %v506 = vpow.pop %v505
    %v507 = vmul.f32 %v329, 1.442695
    %v508 = vpow.pop %v507
    %v509 = vmul.f32 %v330, 1.442695
    %v510 = vpow.pop %v509
    %v511 = vmul.f32 %v331, 1.442695
    %v512 = vpow.pop %v511
    %v513 = vmul.f32 %v332, 1.442695
    %v514 = vpow.pop %v513
    %v515 = vmul.f32 %v333, 1.442695
    %v516 = vpow.pop %v515
    %v517 = vmul.f32 %v334, 1.442695
    %v518 = vpow.pop %v517
    %v519 = vmul.f32 %v335, 1.442695
    %v520 = vpow.pop %v519
    %v521 = vmul.f32 %v336, 1.442695
    %v522 = vpow.pop %v521
    %v523 = vmul.f32 %v337, 1.442695
    %v524 = vpow.pop %v523
    %v525 = vmul.f32 %v338, 1.442695
    %v526 = vpow.pop %v525
    %v527 = vmul.f32 %v339, 1.442695
    %v528 = vpow.pop %v527
    %v529 = vmul.f32 %v340, 1.442695
    %v530 = vpow.pop %v529
    %v531 = vmul.f32 %v341, 1.442695
    %v532 = vpow.pop %v531
    %v533 = vmul.f32 %v342, 1.442695
    %v534 = vpow.pop %v533
    %v535 = vmul.f32 %v343, 1.442695
    %v536 = vpow.pop %v535
    %v537 = vmul.f32 %v344, 1.442695
    %v538 = vpow.pop %v537
    %v539 = vmul.f32 %v345, 1.442695
    %v540 = vpow.pop %v539
    %v541 = vmul.f32 %v346, 1.442695
    %v542 = vpow.pop %v541
    %v543 = vmul.f32 %v347, 1.442695
    %v544 = vpow.pop %v543
    %v545 = vmul.f32 %v348, 1.442695
    %v546 = vpow.pop %v545
    %v547 = vmul.f32 %v349, 1.442695
    %v548 = vpow.pop %v547
    %v549 = vmul.f32 %v350, 1.442695
    %v550 = vpow.pop %v549
    %v551 = vmul.f32 %v351, 1.442695
    %v552 = vpow.pop %v551
    %v553 = vmul.f32 %v352, 1.442695
    %v554 = vpow.pop %v553
    %v555 = vmul.f32 %v353, 1.442695
    %v556 = vpow.pop %v555
    %v557 = vmul.f32 %v354, 1.442695
    %v558 = vpow.pop %v557
    %v559 = vmul.f32 %v355, 1.442695
    %v560 = vpow.pop %v559
    %v561 = vmul.f32 %v356, 1.442695
    %v562 = vpow.pop %v561
    %v563 = vmul.f32 %v357, 1.442695
    %v564 = vpow.pop %v563
    %v565 = vmul.f32 %v358, 1.442695
    %v566 = vpow.pop %v565
    %v567 = vmul.f32 %v359, 1.442695
    %v568 = vpow.pop %v567
    %v569 = vmul.f32 %v360, 1.442695
    %v570 = vpow.pop %v569
    %v571 = vmul.f32 %v361, 1.442695
    %v572 = vpow.pop %v571
    %v573 = vmul.f32 %v362, 1.442695
    %v574 = vpow.pop %v573
    %v575 = vmul.f32 %v363, 1.442695
    %v576 = vpow.pop %v575
    %v577 = vmul.f32 %v364, 1.442695
    %v578 = vpow.pop %v577
    %v579 = vmul.f32 %v365, 1.442695
    %v580 = vpow.pop %v579
    %v581 = vmul.f32 %v366, 1.442695
    %v582 = vpow.pop %v581
    %v583 = vmul.f32 %v367, 1.442695
    %v584 = vpow.pop %v583
    %v585 = vmul.f32 %v368, 1.442695
    %v586 = vpow.pop %v585
    %v587 = vmul.f32 %v369, 1.442695
    %v588 = vpow.pop %v587
    %v589 = vmul.f32 %v370, 1.442695
    %v590 = vpow.pop %v589
    %v591 = vmul.f32 %v371, 1.442695
    %v592 = vpow.pop %v591
    %v593 = vmul.f32 %v372, 1.442695
    %v594 = vpow.pop %v593
    %v595 = vmul.f32 %v373, 1.442695
    %v596 = vpow.pop %v595
    %v597 = vmul.f32 %v374, 1.442695
    %v598 = vpow.pop %v597
    %v599 = vmul.f32 %v375, 1.442695
    %v600 = vpow.pop %v599
    %v601 = vmul.f32 %v376, 1.442695
    %v602 = vpow.pop %v601
    %v603 = vmul.f32 %v377, 1.442695
    %v604 = vpow.pop %v603
    %v605 = vmul.f32 %v378, 1.442695
    %v606 = vpow.pop %v605
    %v607 = vmul.f32 %v379, 1.442695
    %v608 = vpow.pop %v607
    %v609 = vmul.f32 %v380, 1.442695
    %v610 = vpow.pop %v609
    %v611 = vmul.f32 %v381, 1.442695
    %v612 = vpow.pop %v611
    %v613 = vmul.f32 %v382, 1.442695
    %v614 = vpow.pop %v613
    %v615 = vmul.f32 %v383, 1.442695
    %v616 = vpow.pop %v615
    %v617 = vmul.f32 %v384, 1.442695
    %v618 = vpow.pop %v617
    %v619 = vmul.f32 %v385, 1.442695
    %v620 = vpow.pop %v619
    %v621 = vmul.f32 %v386, 1.442695
    %v622 = vpow.pop %v621
    %v623 = vmul.f32 %v387, 1.442695
    %v624 = vpow.pop %v623
    %v625 = vmul.f32 %v388, 1.442695
    %v626 = vpow.pop %v625
    %v627 = vmul.f32 %v389, 1.442695
    %v628 = vpow.pop %v627
    %v629 = vmul.f32 %v390, 1.442695
    %v630 = vpow.pop %v629
    %v631 = vmul.f32 %v391, 1.442695
    %v632 = vpow.pop %v631
    %v633 = vmul.f32 %v392, 1.442695
    %v634 = vpow.pop %v633
    %v635 = vmul.f32 %v393, 1.442695
    %v636 = vpow.pop %v635
    %v637 = vmul.f32 %v394, 1.442695
    %v638 = vpow.pop %v637
    %v639 = vmul.f32 %v395, 1.442695
    %v640 = vpow.pop %v639
    %v641 = vmul.f32 %v396, 1.442695
    %v642 = vpow.pop %v641
    %v643 = vmul.f32 %v397, 1.442695
    %v644 = vpow.pop %v643
    %v645 = vmul.f32 %v398, 1.442695
    %v646 = vpow.pop %v645
    %v647 = vmul.f32 %v399, 1.442695
    %v648 = vpow.pop %v647
    %v649 = vmul.f32 %v400, 1.442695
    %v650 = vpow.pop %v649
    %v651 = vmul.f32 %v401, 1.442695
    %v652 = vpow.pop %v651
    %v653 = vmul.f32 %v402, 1.442695
    %v654 = vpow.pop %v653
    %v655 = vmul.f32 %v403, 1.442695
    %v656 = vpow.pop %v655
    %v657 = vmul.f32 %v404, 1.442695
    %v658 = vpow.pop %v657
    %v659 = vmul.f32 %v405, 1.442695
    %v660 = vpow.pop %v659
    %v661 = vmul.f32 %v406, 1.442695
    %v662 = vpow.pop %v661
    %v663 = vadd.f32 %v408, 1.0
    %v664 = vlog2.pop %v663
    %v665 = vmul.f32 %v664, 0.6931472
    %v666 = vmul.f32 -0.5, %v408
    %v667 = vadd.f32 %v666, 1.0
    %v668 = vmul.f32 %v667, %v408
    %v669 = vand.u32 2147483647, %v408
    %vm670 = vcmp.lt.f32.partialorder %v669, 0.0004427343
    %v671 = vsel %vm670, %v668, %v665
    %v672 = vadd.f32 %v410, 1.0
    %v673 = vlog2.pop %v672
    %v674 = vmul.f32 %v673, 0.6931472
    %v675 = vmul.f32 -0.5, %v410
    %v676 = vadd.f32 %v675, 1.0
    %v677 = vmul.f32 %v676, %v410
    %v678 = vand.u32 2147483647, %v410
    %vm679 = vcmp.lt.f32.partialorder %v678, 0.0004427343
    %v680 = vsel %vm679, %v677, %v674
    %v681 = vadd.f32 %v412, 1.0
    %v682 = vlog2.pop %v681
    %v683 = vmul.f32 %v682, 0.6931472
    %v684 = vmul.f32 -0.5, %v412
    %v685 = vadd.f32 %v684, 1.0
    %v686 = vmul.f32 %v685, %v412
    %v687 = vand.u32 2147483647, %v412
    %vm688 = vcmp.lt.f32.partialorder %v687, 0.0004427343
    %v689 = vsel %vm688, %v686, %v683
    %v690 = vadd.f32 %v414, 1.0
    %v691 = vlog2.pop %v690
    %v692 = vmul.f32 %v691, 0.6931472
    %v693 = vmul.f32 -0.5, %v414
    %v694 = vadd.f32 %v693, 1.0
    %v695 = vmul.f32 %v694, %v414
    %v696 = vand.u32 2147483647, %v414
    %vm697 = vcmp.lt.f32.partialorder %v696, 0.0004427343
    %v698 = vsel %vm697, %v695, %v692
    %v699 = vadd.f32 %v416, 1.0
    %v700 = vlog2.pop %v699
    %v701 = vmul.f32 %v700, 0.6931472
    %v702 = vmul.f32 -0.5, %v416
    %v703 = vadd.f32 %v702, 1.0
    %v704 = vmul.f32 %v703, %v416
    %v705 = vand.u32 2147483647, %v416
    %vm706 = vcmp.lt.f32.partialorder %v705, 0.0004427343
    %v707 = vsel %vm706, %v704, %v701
    %v708 = vadd.f32 %v418, 1.0
    %v709 = vlog2.pop %v708
    %v710 = vmul.f32 %v709, 0.6931472
    %v711 = vmul.f32 -0.5, %v418
    %v712 = vadd.f32 %v711, 1.0
    %v713 = vmul.f32 %v712, %v418
    %v714 = vand.u32 2147483647, %v418
    %vm715 = vcmp.lt.f32.partialorder %v714, 0.0004427343
    %v716 = vsel %vm715, %v713, %v710
    %v717 = vadd.f32 %v420, 1.0
    %v718 = vlog2.pop %v717
    %v719 = vmul.f32 %v718, 0.6931472
    %v720 = vmul.f32 -0.5, %v420
    %v721 = vadd.f32 %v720, 1.0
    %v722 = vmul.f32 %v721, %v420
    %v723 = vand.u32 2147483647, %v420
    %vm724 = vcmp.lt.f32.partialorder %v723, 0.0004427343
    %v725 = vsel %vm724, %v722, %v719
    %v726 = vadd.f32 %v422, 1.0
    %v727 = vlog2.pop %v726
    %v728 = vmul.f32 %v727, 0.6931472
    %v729 = vmul.f32 -0.5, %v422
    %v730 = vadd.f32 %v729, 1.0
    %v731 = vmul.f32 %v730, %v422
    %v732 = vand.u32 2147483647, %v422
    %vm733 = vcmp.lt.f32.partialorder %v732, 0.0004427343
    %v734 = vsel %vm733, %v731, %v728
    %v735 = vadd.f32 %v424, 1.0
    %v736 = vlog2.pop %v735
    %v737 = vmul.f32 %v736, 0.6931472
    %v738 = vmul.f32 -0.5, %v424
    %v739 = vadd.f32 %v738, 1.0
    %v740 = vmul.f32 %v739, %v424
    %v741 = vand.u32 2147483647, %v424
    %vm742 = vcmp.lt.f32.partialorder %v741, 0.0004427343
    %v743 = vsel %vm742, %v740, %v737
    %v744 = vadd.f32 %v426, 1.0
    %v745 = vlog2.pop %v744
    %v746 = vmul.f32 %v745, 0.6931472
    %v747 = vmul.f32 -0.5, %v426
    %v748 = vadd.f32 %v747, 1.0
    %v749 = vmul.f32 %v748, %v426
    %v750 = vand.u32 2147483647, %v426
    %vm751 = vcmp.lt.f32.partialorder %v750, 0.0004427343
    %v752 = vsel %vm751, %v749, %v746
    %v753 = vadd.f32 %v428, 1.0
    %v754 = vlog2.pop %v753
    %v755 = vmul.f32 %v754, 0.6931472
    %v756 = vmul.f32 -0.5, %v428
    %v757 = vadd.f32 %v756, 1.0
    %v758 = vmul.f32 %v757, %v428
    %v759 = vand.u32 2147483647, %v428
    %vm760 = vcmp.lt.f32.partialorder %v759, 0.0004427343
    %v761 = vsel %vm760, %v758, %v755
    %v762 = vadd.f32 %v430, 1.0
    %v763 = vlog2.pop %v762
    %v764 = vmul.f32 %v763, 0.6931472
    %v765 = vmul.f32 -0.5, %v430
    %v766 = vadd.f32 %v765, 1.0
    %v767 = vmul.f32 %v766, %v430
    %v768 = vand.u32 2147483647, %v430
    %vm769 = vcmp.lt.f32.partialorder %v768, 0.0004427343
    %v770 = vsel %vm769, %v767, %v764
    %v771 = vadd.f32 %v432, 1.0
    %v772 = vlog2.pop %v771
    %v773 = vmul.f32 %v772, 0.6931472
    %v774 = vmul.f32 -0.5, %v432
    %v775 = vadd.f32 %v774, 1.0
    %v776 = vmul.f32 %v775, %v432
    %v777 = vand.u32 2147483647, %v432
    %vm778 = vcmp.lt.f32.partialorder %v777, 0.0004427343
    %v779 = vsel %vm778, %v776, %v773
    %v780 = vadd.f32 %v434, 1.0
    %v781 = vlog2.pop %v780
    %v782 = vmul.f32 %v781, 0.6931472
    %v783 = vmul.f32 -0.5, %v434
    %v784 = vadd.f32 %v783, 1.0
    %v785 = vmul.f32 %v784, %v434
    %v786 = vand.u32 2147483647, %v434
    %vm787 = vcmp.lt.f32.partialorder %v786, 0.0004427343
    %v788 = vsel %vm787, %v785, %v782
    %v789 = vadd.f32 %v436, 1.0
    %v790 = vlog2.pop %v789
    %v791 = vmul.f32 %v790, 0.6931472
    %v792 = vmul.f32 -0.5, %v436
    %v793 = vadd.f32 %v792, 1.0
    %v794 = vmul.f32 %v793, %v436
    %v795 = vand.u32 2147483647, %v436
    %vm796 = vcmp.lt.f32.partialorder %v795, 0.0004427343
    %v797 = vsel %vm796, %v794, %v791
    %v798 = vadd.f32 %v438, 1.0
    %v799 = vlog2.pop %v798
    %v800 = vmul.f32 %v799, 0.6931472
    %v801 = vmul.f32 -0.5, %v438
    %v802 = vadd.f32 %v801, 1.0
    %v803 = vmul.f32 %v802, %v438
    %v804 = vand.u32 2147483647, %v438
    %vm805 = vcmp.lt.f32.partialorder %v804, 0.0004427343
    %v806 = vsel %vm805, %v803, %v800
    %v807 = vadd.f32 %v440, 1.0
    %v808 = vlog2.pop %v807
    %v809 = vmul.f32 %v808, 0.6931472
    %v810 = vmul.f32 -0.5, %v440
    %v811 = vadd.f32 %v810, 1.0
    %v812 = vmul.f32 %v811, %v440
    %v813 = vand.u32 2147483647, %v440
    %vm814 = vcmp.lt.f32.partialorder %v813, 0.0004427343
    %v815 = vsel %vm814, %v812, %v809
    %v816 = vadd.f32 %v442, 1.0
    %v817 = vlog2.pop %v816
    %v818 = vmul.f32 %v817, 0.6931472
    %v819 = vmul.f32 -0.5, %v442
    %v820 = vadd.f32 %v819, 1.0
    %v821 = vmul.f32 %v820, %v442
    %v822 = vand.u32 2147483647, %v442
    %vm823 = vcmp.lt.f32.partialorder %v822, 0.0004427343
    %v824 = vsel %vm823, %v821, %v818
    %v825 = vadd.f32 %v444, 1.0
    %v826 = vlog2.pop %v825
    %v827 = vmul.f32 %v826, 0.6931472
    %v828 = vmul.f32 -0.5, %v444
    %v829 = vadd.f32 %v828, 1.0
    %v830 = vmul.f32 %v829, %v444
    %v831 = vand.u32 2147483647, %v444
    %vm832 = vcmp.lt.f32.partialorder %v831, 0.0004427343
    %v833 = vsel %vm832, %v830, %v827
    %v834 = vadd.f32 %v446, 1.0
    %v835 = vlog2.pop %v834
    %v836 = vmul.f32 %v835, 0.6931472
    %v837 = vmul.f32 -0.5, %v446
    %v838 = vadd.f32 %v837, 1.0
    %v839 = vmul.f32 %v838, %v446
    %v840 = vand.u32 2147483647, %v446
    %vm841 = vcmp.lt.f32.partialorder %v840, 0.0004427343
    %v842 = vsel %vm841, %v839, %v836
    %v843 = vadd.f32 %v448, 1.0
    %v844 = vlog2.pop %v843
    %v845 = vmul.f32 %v844, 0.6931472
    %v846 = vmul.f32 -0.5, %v448
    %v847 = vadd.f32 %v846, 1.0
    %v848 = vmul.f32 %v847, %v448
    %v849 = vand.u32 2147483647, %v448
    %vm850 = vcmp.lt.f32.partialorder %v849, 0.0004427343
    %v851 = vsel %vm850, %v848, %v845
    %v852 = vadd.f32 %v450, 1.0
    %v853 = vlog2.pop %v852
    %v854 = vmul.f32 %v853, 0.6931472
    %v855 = vmul.f32 -0.5, %v450
    %v856 = vadd.f32 %v855, 1.0
    %v857 = vmul.f32 %v856, %v450
    %v858 = vand.u32 2147483647, %v450
    %vm859 = vcmp.lt.f32.partialorder %v858, 0.0004427343
    %v860 = vsel %vm859, %v857, %v854
    %v861 = vadd.f32 %v452, 1.0
    %v862 = vlog2.pop %v861
    %v863 = vmul.f32 %v862, 0.6931472
    %v864 = vmul.f32 -0.5, %v452
    %v865 = vadd.f32 %v864, 1.0
    %v866 = vmul.f32 %v865, %v452
    %v867 = vand.u32 2147483647, %v452
    %vm868 = vcmp.lt.f32.partialorder %v867, 0.0004427343
    %v869 = vsel %vm868, %v866, %v863
    %v870 = vadd.f32 %v454, 1.0
    %v871 = vlog2.pop %v870
    %v872 = vmul.f32 %v871, 0.6931472
    %v873 = vmul.f32 -0.5, %v454
    %v874 = vadd.f32 %v873, 1.0
    %v875 = vmul.f32 %v874, %v454
    %v876 = vand.u32 2147483647, %v454
    %vm877 = vcmp.lt.f32.partialorder %v876, 0.0004427343
    %v878 = vsel %vm877, %v875, %v872
    %v879 = vadd.f32 %v456, 1.0
    %v880 = vlog2.pop %v879
    %v881 = vmul.f32 %v880, 0.6931472
    %v882 = vmul.f32 -0.5, %v456
    %v883 = vadd.f32 %v882, 1.0
    %v884 = vmul.f32 %v883, %v456
    %v885 = vand.u32 2147483647, %v456
    %vm886 = vcmp.lt.f32.partialorder %v885, 0.0004427343
    %v887 = vsel %vm886, %v884, %v881
    %v888 = vadd.f32 %v458, 1.0
    %v889 = vlog2.pop %v888
    %v890 = vmul.f32 %v889, 0.6931472
    %v891 = vmul.f32 -0.5, %v458
    %v892 = vadd.f32 %v891, 1.0
    %v893 = vmul.f32 %v892, %v458
    %v894 = vand.u32 2147483647, %v458
    %vm895 = vcmp.lt.f32.partialorder %v894, 0.0004427343
    %v896 = vsel %vm895, %v893, %v890
    %v897 = vadd.f32 %v460, 1.0
    %v898 = vlog2.pop %v897
    %v899 = vmul.f32 %v898, 0.6931472
    %v900 = vmul.f32 -0.5, %v460
    %v901 = vadd.f32 %v900, 1.0
    %v902 = vmul.f32 %v901, %v460
    %v903 = vand.u32 2147483647, %v460
    %vm904 = vcmp.lt.f32.partialorder %v903, 0.0004427343
    %v905 = vsel %vm904, %v902, %v899
    %v906 = vadd.f32 %v462, 1.0
    %v907 = vlog2.pop %v906
    %v908 = vmul.f32 %v907, 0.6931472
    %v909 = vmul.f32 -0.5, %v462
    %v910 = vadd.f32 %v909, 1.0
    %v911 = vmul.f32 %v910, %v462
    %v912 = vand.u32 2147483647, %v462
    %vm913 = vcmp.lt.f32.partialorder %v912, 0.0004427343
    %v914 = vsel %vm913, %v911, %v908
    %v915 = vadd.f32 %v464, 1.0
    %v916 = vlog2.pop %v915
    %v917 = vmul.f32 %v916, 0.6931472
    %v918 = vmul.f32 -0.5, %v464
    %v919 = vadd.f32 %v918, 1.0
    %v920 = vmul.f32 %v919, %v464
    %v921 = vand.u32 2147483647, %v464
    %vm922 = vcmp.lt.f32.partialorder %v921, 0.0004427343
    %v923 = vsel %vm922, %v920, %v917
    %v924 = vadd.f32 %v466, 1.0
    %v925 = vlog2.pop %v924
    %v926 = vmul.f32 %v925, 0.6931472
    %v927 = vmul.f32 -0.5, %v466
    %v928 = vadd.f32 %v927, 1.0
    %v929 = vmul.f32 %v928, %v466
    %v930 = vand.u32 2147483647, %v466
    %vm931 = vcmp.lt.f32.partialorder %v930, 0.0004427343
    %v932 = vsel %vm931, %v929, %v926
    %v933 = vadd.f32 %v468, 1.0
    %v934 = vlog2.pop %v933
    %v935 = vmul.f32 %v934, 0.6931472
    %v936 = vmul.f32 -0.5, %v468
    %v937 = vadd.f32 %v936, 1.0
    %v938 = vmul.f32 %v937, %v468
    %v939 = vand.u32 2147483647, %v468
    %vm940 = vcmp.lt.f32.partialorder %v939, 0.0004427343
    %v941 = vsel %vm940, %v938, %v935
    %v942 = vadd.f32 %v470, 1.0
    %v943 = vlog2.pop %v942
    %v944 = vmul.f32 %v943, 0.6931472
    %v945 = vmul.f32 -0.5, %v470
    %v946 = vadd.f32 %v945, 1.0
    %v947 = vmul.f32 %v946, %v470
    %v948 = vand.u32 2147483647, %v470
    %vm949 = vcmp.lt.f32.partialorder %v948, 0.0004427343
    %v950 = vsel %vm949, %v947, %v944
    %v951 = vadd.f32 %v472, 1.0
    %v952 = vlog2.pop %v951
    %v953 = vmul.f32 %v952, 0.6931472
    %v954 = vmul.f32 -0.5, %v472
    %v955 = vadd.f32 %v954, 1.0
    %v956 = vmul.f32 %v955, %v472
    %v957 = vand.u32 2147483647, %v472
    %vm958 = vcmp.lt.f32.partialorder %v957, 0.0004427343
    %v959 = vsel %vm958, %v956, %v953
    %v960 = vadd.f32 %v474, 1.0
    %v961 = vlog2.pop %v960
    %v962 = vmul.f32 %v961, 0.6931472
    %v963 = vmul.f32 -0.5, %v474
    %v964 = vadd.f32 %v963, 1.0
    %v965 = vmul.f32 %v964, %v474
    %v966 = vand.u32 2147483647, %v474
    %vm967 = vcmp.lt.f32.partialorder %v966, 0.0004427343
    %v968 = vsel %vm967, %v965, %v962
    %v969 = vadd.f32 %v476, 1.0
    %v970 = vlog2.pop %v969
    %v971 = vmul.f32 %v970, 0.6931472
    %v972 = vmul.f32 -0.5, %v476
    %v973 = vadd.f32 %v972, 1.0
    %v974 = vmul.f32 %v973, %v476
    %v975 = vand.u32 2147483647, %v476
    %vm976 = vcmp.lt.f32.partialorder %v975, 0.0004427343
    %v977 = vsel %vm976, %v974, %v971
    %v978 = vadd.f32 %v478, 1.0
    %v979 = vlog2.pop %v978
    %v980 = vmul.f32 %v979, 0.6931472
    %v981 = vmul.f32 -0.5, %v478
    %v982 = vadd.f32 %v981, 1.0
    %v983 = vmul.f32 %v982, %v478
    %v984 = vand.u32 2147483647, %v478
    %vm985 = vcmp.lt.f32.partialorder %v984, 0.0004427343
    %v986 = vsel %vm985, %v983, %v980
    %v987 = vadd.f32 %v480, 1.0
    %v988 = vlog2.pop %v987
    %v989 = vmul.f32 %v988, 0.6931472
    %v990 = vmul.f32 -0.5, %v480
    %v991 = vadd.f32 %v990, 1.0
    %v992 = vmul.f32 %v991, %v480
    %v993 = vand.u32 2147483647, %v480
    %vm994 = vcmp.lt.f32.partialorder %v993, 0.0004427343
    %v995 = vsel %vm994, %v992, %v989
    %v996 = vadd.f32 %v482, 1.0
    %v997 = vlog2.pop %v996
    %v998 = vmul.f32 %v997, 0.6931472
    %v999 = vmul.f32 -0.5, %v482
    %v1000 = vadd.f32 %v999, 1.0
    %v1001 = vmul.f32 %v1000, %v482
    %v1002 = vand.u32 2147483647, %v482
    %vm1003 = vcmp.lt.f32.partialorder %v1002, 0.0004427343
    %v1004 = vsel %vm1003, %v1001, %v998
    %v1005 = vadd.f32 %v484, 1.0
    %v1006 = vlog2.pop %v1005
    %v1007 = vmul.f32 %v1006, 0.6931472
    %v1008 = vmul.f32 -0.5, %v484
    %v1009 = vadd.f32 %v1008, 1.0
    %v1010 = vmul.f32 %v1009, %v484
    %v1011 = vand.u32 2147483647, %v484
    %vm1012 = vcmp.lt.f32.partialorder %v1011, 0.0004427343
    %v1013 = vsel %vm1012, %v1010, %v1007
    %v1014 = vadd.f32 %v486, 1.0
    %v1015 = vlog2.pop %v1014
    %v1016 = vmul.f32 %v1015, 0.6931472
    %v1017 = vmul.f32 -0.5, %v486
    %v1018 = vadd.f32 %v1017, 1.0
    %v1019 = vmul.f32 %v1018, %v486
    %v1020 = vand.u32 2147483647, %v486
    %vm1021 = vcmp.lt.f32.partialorder %v1020, 0.0004427343
    %v1022 = vsel %vm1021, %v1019, %v1016
    %v1023 = vadd.f32 %v488, 1.0
    %v1024 = vlog2.pop %v1023
    %v1025 = vmul.f32 %v1024, 0.6931472
    %v1026 = vmul.f32 -0.5, %v488
    %v1027 = vadd.f32 %v1026, 1.0
    %v1028 = vmul.f32 %v1027, %v488
    %v1029 = vand.u32 2147483647, %v488
    %vm1030 = vcmp.lt.f32.partialorder %v1029, 0.0004427343
    %v1031 = vsel %vm1030, %v1028, %v1025
    %v1032 = vadd.f32 %v490, 1.0
    %v1033 = vlog2.pop %v1032
    %v1034 = vmul.f32 %v1033, 0.6931472
    %v1035 = vmul.f32 -0.5, %v490
    %v1036 = vadd.f32 %v1035, 1.0
    %v1037 = vmul.f32 %v1036, %v490
    %v1038 = vand.u32 2147483647, %v490
    %vm1039 = vcmp.lt.f32.partialorder %v1038, 0.0004427343
    %v1040 = vsel %vm1039, %v1037, %v1034
    %v1041 = vadd.f32 %v492, 1.0
    %v1042 = vlog2.pop %v1041
    %v1043 = vmul.f32 %v1042, 0.6931472
    %v1044 = vmul.f32 -0.5, %v492
    %v1045 = vadd.f32 %v1044, 1.0
    %v1046 = vmul.f32 %v1045, %v492
    %v1047 = vand.u32 2147483647, %v492
    %vm1048 = vcmp.lt.f32.partialorder %v1047, 0.0004427343
    %v1049 = vsel %vm1048, %v1046, %v1043
    %v1050 = vadd.f32 %v494, 1.0
    %v1051 = vlog2.pop %v1050
    %v1052 = vmul.f32 %v1051, 0.6931472
    %v1053 = vmul.f32 -0.5, %v494
    %v1054 = vadd.f32 %v1053, 1.0
    %v1055 = vmul.f32 %v1054, %v494
    %v1056 = vand.u32 2147483647, %v494
    %vm1057 = vcmp.lt.f32.partialorder %v1056, 0.0004427343
    %v1058 = vsel %vm1057, %v1055, %v1052
    %v1059 = vadd.f32 %v496, 1.0
    %v1060 = vlog2.pop %v1059
    %v1061 = vmul.f32 %v1060, 0.6931472
    %v1062 = vmul.f32 -0.5, %v496
    %v1063 = vadd.f32 %v1062, 1.0
    %v1064 = vmul.f32 %v1063, %v496
    %v1065 = vand.u32 2147483647, %v496
    %vm1066 = vcmp.lt.f32.partialorder %v1065, 0.0004427343
    %v1067 = vsel %vm1066, %v1064, %v1061
    %v1068 = vadd.f32 %v498, 1.0
    %v1069 = vlog2.pop %v1068
    %v1070 = vmul.f32 %v1069, 0.6931472
    %v1071 = vmul.f32 -0.5, %v498
    %v1072 = vadd.f32 %v1071, 1.0
    %v1073 = vmul.f32 %v1072, %v498
    %v1074 = vand.u32 2147483647, %v498
    %vm1075 = vcmp.lt.f32.partialorder %v1074, 0.0004427343
    %v1076 = vsel %vm1075, %v1073, %v1070
    %v1077 = vadd.f32 %v500, 1.0
    %v1078 = vlog2.pop %v1077
    %v1079 = vmul.f32 %v1078, 0.6931472
    %v1080 = vmul.f32 -0.5, %v500
    %v1081 = vadd.f32 %v1080, 1.0
    %v1082 = vmul.f32 %v1081, %v500
    %v1083 = vand.u32 2147483647, %v500
    %vm1084 = vcmp.lt.f32.partialorder %v1083, 0.0004427343
    %v1085 = vsel %vm1084, %v1082, %v1079
    %v1086 = vadd.f32 %v502, 1.0
    %v1087 = vlog2.pop %v1086
    %v1088 = vmul.f32 %v1087, 0.6931472
    %v1089 = vmul.f32 -0.5, %v502
    %v1090 = vadd.f32 %v1089, 1.0
    %v1091 = vmul.f32 %v1090, %v502
    %v1092 = vand.u32 2147483647, %v502
    %vm1093 = vcmp.lt.f32.partialorder %v1092, 0.0004427343
    %v1094 = vsel %vm1093, %v1091, %v1088
    %v1095 = vadd.f32 %v504, 1.0
    %v1096 = vlog2.pop %v1095
    %v1097 = vmul.f32 %v1096, 0.6931472
    %v1098 = vmul.f32 -0.5, %v504
    %v1099 = vadd.f32 %v1098, 1.0
    %v1100 = vmul.f32 %v1099, %v504
    %v1101 = vand.u32 2147483647, %v504
    %vm1102 = vcmp.lt.f32.partialorder %v1101, 0.0004427343
    %v1103 = vsel %vm1102, %v1100, %v1097
    %v1104 = vadd.f32 %v506, 1.0
    %v1105 = vlog2.pop %v1104
    %v1106 = vmul.f32 %v1105, 0.6931472
    %v1107 = vmul.f32 -0.5, %v506
    %v1108 = vadd.f32 %v1107, 1.0
    %v1109 = vmul.f32 %v1108, %v506
    %v1110 = vand.u32 2147483647, %v506
    %vm1111 = vcmp.lt.f32.partialorder %v1110, 0.0004427343
    %v1112 = vsel %vm1111, %v1109, %v1106
    %v1113 = vadd.f32 %v508, 1.0
    %v1114 = vlog2.pop %v1113
    %v1115 = vmul.f32 %v1114, 0.6931472
    %v1116 = vmul.f32 -0.5, %v508
    %v1117 = vadd.f32 %v1116, 1.0
    %v1118 = vmul.f32 %v1117, %v508
    %v1119 = vand.u32 2147483647, %v508
    %vm1120 = vcmp.lt.f32.partialorder %v1119, 0.0004427343
    %v1121 = vsel %vm1120, %v1118, %v1115
    %v1122 = vadd.f32 %v510, 1.0
    %v1123 = vlog2.pop %v1122
    %v1124 = vmul.f32 %v1123, 0.6931472
    %v1125 = vmul.f32 -0.5, %v510
    %v1126 = vadd.f32 %v1125, 1.0
    %v1127 = vmul.f32 %v1126, %v510
    %v1128 = vand.u32 2147483647, %v510
    %vm1129 = vcmp.lt.f32.partialorder %v1128, 0.0004427343
    %v1130 = vsel %vm1129, %v1127, %v1124
    %v1131 = vadd.f32 %v512, 1.0
    %v1132 = vlog2.pop %v1131
    %v1133 = vmul.f32 %v1132, 0.6931472
    %v1134 = vmul.f32 -0.5, %v512
    %v1135 = vadd.f32 %v1134, 1.0
    %v1136 = vmul.f32 %v1135, %v512
    %v1137 = vand.u32 2147483647, %v512
    %vm1138 = vcmp.lt.f32.partialorder %v1137, 0.0004427343
    %v1139 = vsel %vm1138, %v1136, %v1133
    %v1140 = vadd.f32 %v514, 1.0
    %v1141 = vlog2.pop %v1140
    %v1142 = vmul.f32 %v1141, 0.6931472
    %v1143 = vmul.f32 -0.5, %v514
    %v1144 = vadd.f32 %v1143, 1.0
    %v1145 = vmul.f32 %v1144, %v514
    %v1146 = vand.u32 2147483647, %v514
    %vm1147 = vcmp.lt.f32.partialorder %v1146, 0.0004427343
    %v1148 = vsel %vm1147, %v1145, %v1142
    %v1149 = vadd.f32 %v516, 1.0
    %v1150 = vlog2.pop %v1149
    %v1151 = vmul.f32 %v1150, 0.6931472
    %v1152 = vmul.f32 -0.5, %v516
    %v1153 = vadd.f32 %v1152, 1.0
    %v1154 = vmul.f32 %v1153, %v516
    %v1155 = vand.u32 2147483647, %v516
    %vm1156 = vcmp.lt.f32.partialorder %v1155, 0.0004427343
    %v1157 = vsel %vm1156, %v1154, %v1151
    %v1158 = vadd.f32 %v518, 1.0
    %v1159 = vlog2.pop %v1158
    %v1160 = vmul.f32 %v1159, 0.6931472
    %v1161 = vmul.f32 -0.5, %v518
    %v1162 = vadd.f32 %v1161, 1.0
    %v1163 = vmul.f32 %v1162, %v518
    %v1164 = vand.u32 2147483647, %v518
    %vm1165 = vcmp.lt.f32.partialorder %v1164, 0.0004427343
    %v1166 = vsel %vm1165, %v1163, %v1160
    %v1167 = vadd.f32 %v520, 1.0
    %v1168 = vlog2.pop %v1167
    %v1169 = vmul.f32 %v1168, 0.6931472
    %v1170 = vmul.f32 -0.5, %v520
    %v1171 = vadd.f32 %v1170, 1.0
    %v1172 = vmul.f32 %v1171, %v520
    %v1173 = vand.u32 2147483647, %v520
    %vm1174 = vcmp.lt.f32.partialorder %v1173, 0.0004427343
    %v1175 = vsel %vm1174, %v1172, %v1169
    %v1176 = vadd.f32 %v522, 1.0
    %v1177 = vlog2.pop %v1176
    %v1178 = vmul.f32 %v1177, 0.6931472
    %v1179 = vmul.f32 -0.5, %v522
    %v1180 = vadd.f32 %v1179, 1.0
    %v1181 = vmul.f32 %v1180, %v522
    %v1182 = vand.u32 2147483647, %v522
    %vm1183 = vcmp.lt.f32.partialorder %v1182, 0.0004427343
    %v1184 = vsel %vm1183, %v1181, %v1178
    %v1185 = vadd.f32 %v524, 1.0
    %v1186 = vlog2.pop %v1185
    %v1187 = vmul.f32 %v1186, 0.6931472
    %v1188 = vmul.f32 -0.5, %v524
    %v1189 = vadd.f32 %v1188, 1.0
    %v1190 = vmul.f32 %v1189, %v524
    %v1191 = vand.u32 2147483647, %v524
    %vm1192 = vcmp.lt.f32.partialorder %v1191, 0.0004427343
    %v1193 = vsel %vm1192, %v1190, %v1187
    %v1194 = vadd.f32 %v526, 1.0
    %v1195 = vlog2.pop %v1194
    %v1196 = vmul.f32 %v1195, 0.6931472
    %v1197 = vmul.f32 -0.5, %v526
    %v1198 = vadd.f32 %v1197, 1.0
    %v1199 = vmul.f32 %v1198, %v526
    %v1200 = vand.u32 2147483647, %v526
    %vm1201 = vcmp.lt.f32.partialorder %v1200, 0.0004427343
    %v1202 = vsel %vm1201, %v1199, %v1196
    %v1203 = vadd.f32 %v528, 1.0
    %v1204 = vlog2.pop %v1203
    %v1205 = vmul.f32 %v1204, 0.6931472
    %v1206 = vmul.f32 -0.5, %v528
    %v1207 = vadd.f32 %v1206, 1.0
    %v1208 = vmul.f32 %v1207, %v528
    %v1209 = vand.u32 2147483647, %v528
    %vm1210 = vcmp.lt.f32.partialorder %v1209, 0.0004427343
    %v1211 = vsel %vm1210, %v1208, %v1205
    %v1212 = vadd.f32 %v530, 1.0
    %v1213 = vlog2.pop %v1212
    %v1214 = vmul.f32 %v1213, 0.6931472
    %v1215 = vmul.f32 -0.5, %v530
    %v1216 = vadd.f32 %v1215, 1.0
    %v1217 = vmul.f32 %v1216, %v530
    %v1218 = vand.u32 2147483647, %v530
    %vm1219 = vcmp.lt.f32.partialorder %v1218, 0.0004427343
    %v1220 = vsel %vm1219, %v1217, %v1214
    %v1221 = vadd.f32 %v532, 1.0
    %v1222 = vlog2.pop %v1221
    %v1223 = vmul.f32 %v1222, 0.6931472
    %v1224 = vmul.f32 -0.5, %v532
    %v1225 = vadd.f32 %v1224, 1.0
    %v1226 = vmul.f32 %v1225, %v532
    %v1227 = vand.u32 2147483647, %v532
    %vm1228 = vcmp.lt.f32.partialorder %v1227, 0.0004427343
    %v1229 = vsel %vm1228, %v1226, %v1223
    %v1230 = vadd.f32 %v534, 1.0
    %v1231 = vlog2.pop %v1230
    %v1232 = vmul.f32 %v1231, 0.6931472
    %v1233 = vmul.f32 -0.5, %v534
    %v1234 = vadd.f32 %v1233, 1.0
    %v1235 = vmul.f32 %v1234, %v534
    %v1236 = vand.u32 2147483647, %v534
    %vm1237 = vcmp.lt.f32.partialorder %v1236, 0.0004427343
    %v1238 = vsel %vm1237, %v1235, %v1232
    %v1239 = vadd.f32 %v536, 1.0
    %v1240 = vlog2.pop %v1239
    %v1241 = vmul.f32 %v1240, 0.6931472
    %v1242 = vmul.f32 -0.5, %v536
    %v1243 = vadd.f32 %v1242, 1.0
    %v1244 = vmul.f32 %v1243, %v536
    %v1245 = vand.u32 2147483647, %v536
    %vm1246 = vcmp.lt.f32.partialorder %v1245, 0.0004427343
    %v1247 = vsel %vm1246, %v1244, %v1241
    %v1248 = vadd.f32 %v538, 1.0
    %v1249 = vlog2.pop %v1248
    %v1250 = vmul.f32 %v1249, 0.6931472
    %v1251 = vmul.f32 -0.5, %v538
    %v1252 = vadd.f32 %v1251, 1.0
    %v1253 = vmul.f32 %v1252, %v538
    %v1254 = vand.u32 2147483647, %v538
    %vm1255 = vcmp.lt.f32.partialorder %v1254, 0.0004427343
    %v1256 = vsel %vm1255, %v1253, %v1250
    %v1257 = vadd.f32 %v540, 1.0
    %v1258 = vlog2.pop %v1257
    %v1259 = vmul.f32 %v1258, 0.6931472
    %v1260 = vmul.f32 -0.5, %v540
    %v1261 = vadd.f32 %v1260, 1.0
    %v1262 = vmul.f32 %v1261, %v540
    %v1263 = vand.u32 2147483647, %v540
    %vm1264 = vcmp.lt.f32.partialorder %v1263, 0.0004427343
    %v1265 = vsel %vm1264, %v1262, %v1259
    %v1266 = vadd.f32 %v542, 1.0
    %v1267 = vlog2.pop %v1266
    %v1268 = vmul.f32 %v1267, 0.6931472
    %v1269 = vmul.f32 -0.5, %v542
    %v1270 = vadd.f32 %v1269, 1.0
    %v1271 = vmul.f32 %v1270, %v542
    %v1272 = vand.u32 2147483647, %v542
    %vm1273 = vcmp.lt.f32.partialorder %v1272, 0.0004427343
    %v1274 = vsel %vm1273, %v1271, %v1268
    %v1275 = vadd.f32 %v544, 1.0
    %v1276 = vlog2.pop %v1275
    %v1277 = vmul.f32 %v1276, 0.6931472
    %v1278 = vmul.f32 -0.5, %v544
    %v1279 = vadd.f32 %v1278, 1.0
    %v1280 = vmul.f32 %v1279, %v544
    %v1281 = vand.u32 2147483647, %v544
    %vm1282 = vcmp.lt.f32.partialorder %v1281, 0.0004427343
    %v1283 = vsel %vm1282, %v1280, %v1277
    %v1284 = vadd.f32 %v546, 1.0
    %v1285 = vlog2.pop %v1284
    %v1286 = vmul.f32 %v1285, 0.6931472
    %v1287 = vmul.f32 -0.5, %v546
    %v1288 = vadd.f32 %v1287, 1.0
    %v1289 = vmul.f32 %v1288, %v546
    %v1290 = vand.u32 2147483647, %v546
    %vm1291 = vcmp.lt.f32.partialorder %v1290, 0.0004427343
    %v1292 = vsel %vm1291, %v1289, %v1286
    %v1293 = vadd.f32 %v548, 1.0
    %v1294 = vlog2.pop %v1293
    %v1295 = vmul.f32 %v1294, 0.6931472
    %v1296 = vmul.f32 -0.5, %v548
    %v1297 = vadd.f32 %v1296, 1.0
    %v1298 = vmul.f32 %v1297, %v548
    %v1299 = vand.u32 2147483647, %v548
    %vm1300 = vcmp.lt.f32.partialorder %v1299, 0.0004427343
    %v1301 = vsel %vm1300, %v1298, %v1295
    %v1302 = vadd.f32 %v550, 1.0
    %v1303 = vlog2.pop %v1302
    %v1304 = vmul.f32 %v1303, 0.6931472
    %v1305 = vmul.f32 -0.5, %v550
    %v1306 = vadd.f32 %v1305, 1.0
    %v1307 = vmul.f32 %v1306, %v550
    %v1308 = vand.u32 2147483647, %v550
    %vm1309 = vcmp.lt.f32.partialorder %v1308, 0.0004427343
    %v1310 = vsel %vm1309, %v1307, %v1304
    %v1311 = vadd.f32 %v552, 1.0
    %v1312 = vlog2.pop %v1311
    %v1313 = vmul.f32 %v1312, 0.6931472
    %v1314 = vmul.f32 -0.5, %v552
    %v1315 = vadd.f32 %v1314, 1.0
    %v1316 = vmul.f32 %v1315, %v552
    %v1317 = vand.u32 2147483647, %v552
    %vm1318 = vcmp.lt.f32.partialorder %v1317, 0.0004427343
    %v1319 = vsel %vm1318, %v1316, %v1313
    %v1320 = vadd.f32 %v554, 1.0
    %v1321 = vlog2.pop %v1320
    %v1322 = vmul.f32 %v1321, 0.6931472
    %v1323 = vmul.f32 -0.5, %v554
    %v1324 = vadd.f32 %v1323, 1.0
    %v1325 = vmul.f32 %v1324, %v554
    %v1326 = vand.u32 2147483647, %v554
    %vm1327 = vcmp.lt.f32.partialorder %v1326, 0.0004427343
    %v1328 = vsel %vm1327, %v1325, %v1322
    %v1329 = vadd.f32 %v556, 1.0
    %v1330 = vlog2.pop %v1329
    %v1331 = vmul.f32 %v1330, 0.6931472
    %v1332 = vmul.f32 -0.5, %v556
    %v1333 = vadd.f32 %v1332, 1.0
    %v1334 = vmul.f32 %v1333, %v556
    %v1335 = vand.u32 2147483647, %v556
    %vm1336 = vcmp.lt.f32.partialorder %v1335, 0.0004427343
    %v1337 = vsel %vm1336, %v1334, %v1331
    %v1338 = vadd.f32 %v558, 1.0
    %v1339 = vlog2.pop %v1338
    %v1340 = vmul.f32 %v1339, 0.6931472
    %v1341 = vmul.f32 -0.5, %v558
    %v1342 = vadd.f32 %v1341, 1.0
    %v1343 = vmul.f32 %v1342, %v558
    %v1344 = vand.u32 2147483647, %v558
    %vm1345 = vcmp.lt.f32.partialorder %v1344, 0.0004427343
    %v1346 = vsel %vm1345, %v1343, %v1340
    %v1347 = vadd.f32 %v560, 1.0
    %v1348 = vlog2.pop %v1347
    %v1349 = vmul.f32 %v1348, 0.6931472
    %v1350 = vmul.f32 -0.5, %v560
    %v1351 = vadd.f32 %v1350, 1.0
    %v1352 = vmul.f32 %v1351, %v560
    %v1353 = vand.u32 2147483647, %v560
    %vm1354 = vcmp.lt.f32.partialorder %v1353, 0.0004427343
    %v1355 = vsel %vm1354, %v1352, %v1349
    %v1356 = vadd.f32 %v562, 1.0
    %v1357 = vlog2.pop %v1356
    %v1358 = vmul.f32 %v1357, 0.6931472
    %v1359 = vmul.f32 -0.5, %v562
    %v1360 = vadd.f32 %v1359, 1.0
    %v1361 = vmul.f32 %v1360, %v562
    %v1362 = vand.u32 2147483647, %v562
    %vm1363 = vcmp.lt.f32.partialorder %v1362, 0.0004427343
    %v1364 = vsel %vm1363, %v1361, %v1358
    %v1365 = vadd.f32 %v564, 1.0
    %v1366 = vlog2.pop %v1365
    %v1367 = vmul.f32 %v1366, 0.6931472
    %v1368 = vmul.f32 -0.5, %v564
    %v1369 = vadd.f32 %v1368, 1.0
    %v1370 = vmul.f32 %v1369, %v564
    %v1371 = vand.u32 2147483647, %v564
    %vm1372 = vcmp.lt.f32.partialorder %v1371, 0.0004427343
    %v1373 = vsel %vm1372, %v1370, %v1367
    %v1374 = vadd.f32 %v566, 1.0
    %v1375 = vlog2.pop %v1374
    %v1376 = vmul.f32 %v1375, 0.6931472
    %v1377 = vmul.f32 -0.5, %v566
    %v1378 = vadd.f32 %v1377, 1.0
    %v1379 = vmul.f32 %v1378, %v566
    %v1380 = vand.u32 2147483647, %v566
    %vm1381 = vcmp.lt.f32.partialorder %v1380, 0.0004427343
    %v1382 = vsel %vm1381, %v1379, %v1376
    %v1383 = vadd.f32 %v568, 1.0
    %v1384 = vlog2.pop %v1383
    %v1385 = vmul.f32 %v1384, 0.6931472
    %v1386 = vmul.f32 -0.5, %v568
    %v1387 = vadd.f32 %v1386, 1.0
    %v1388 = vmul.f32 %v1387, %v568
    %v1389 = vand.u32 2147483647, %v568
    %vm1390 = vcmp.lt.f32.partialorder %v1389, 0.0004427343
    %v1391 = vsel %vm1390, %v1388, %v1385
    %v1392 = vadd.f32 %v570, 1.0
    %v1393 = vlog2.pop %v1392
    %v1394 = vmul.f32 %v1393, 0.6931472
    %v1395 = vmul.f32 -0.5, %v570
    %v1396 = vadd.f32 %v1395, 1.0
    %v1397 = vmul.f32 %v1396, %v570
    %v1398 = vand.u32 2147483647, %v570
    %vm1399 = vcmp.lt.f32.partialorder %v1398, 0.0004427343
    %v1400 = vsel %vm1399, %v1397, %v1394
    %v1401 = vadd.f32 %v572, 1.0
    %v1402 = vlog2.pop %v1401
    %v1403 = vmul.f32 %v1402, 0.6931472
    %v1404 = vmul.f32 -0.5, %v572
    %v1405 = vadd.f32 %v1404, 1.0
    %v1406 = vmul.f32 %v1405, %v572
    %v1407 = vand.u32 2147483647, %v572
    %vm1408 = vcmp.lt.f32.partialorder %v1407, 0.0004427343
    %v1409 = vsel %vm1408, %v1406, %v1403
    %v1410 = vadd.f32 %v574, 1.0
    %v1411 = vlog2.pop %v1410
    %v1412 = vmul.f32 %v1411, 0.6931472
    %v1413 = vmul.f32 -0.5, %v574
    %v1414 = vadd.f32 %v1413, 1.0
    %v1415 = vmul.f32 %v1414, %v574
    %v1416 = vand.u32 2147483647, %v574
    %vm1417 = vcmp.lt.f32.partialorder %v1416, 0.0004427343
    %v1418 = vsel %vm1417, %v1415, %v1412
    %v1419 = vadd.f32 %v576, 1.0
    %v1420 = vlog2.pop %v1419
    %v1421 = vmul.f32 %v1420, 0.6931472
    %v1422 = vmul.f32 -0.5, %v576
    %v1423 = vadd.f32 %v1422, 1.0
    %v1424 = vmul.f32 %v1423, %v576
    %v1425 = vand.u32 2147483647, %v576
    %vm1426 = vcmp.lt.f32.partialorder %v1425, 0.0004427343
    %v1427 = vsel %vm1426, %v1424, %v1421
    %v1428 = vadd.f32 %v578, 1.0
    %v1429 = vlog2.pop %v1428
    %v1430 = vmul.f32 %v1429, 0.6931472
    %v1431 = vmul.f32 -0.5, %v578
    %v1432 = vadd.f32 %v1431, 1.0
    %v1433 = vmul.f32 %v1432, %v578
    %v1434 = vand.u32 2147483647, %v578
    %vm1435 = vcmp.lt.f32.partialorder %v1434, 0.0004427343
    %v1436 = vsel %vm1435, %v1433, %v1430
    %v1437 = vadd.f32 %v580, 1.0
    %v1438 = vlog2.pop %v1437
    %v1439 = vmul.f32 %v1438, 0.6931472
    %v1440 = vmul.f32 -0.5, %v580
    %v1441 = vadd.f32 %v1440, 1.0
    %v1442 = vmul.f32 %v1441, %v580
    %v1443 = vand.u32 2147483647, %v580
    %vm1444 = vcmp.lt.f32.partialorder %v1443, 0.0004427343
    %v1445 = vsel %vm1444, %v1442, %v1439
    %v1446 = vadd.f32 %v582, 1.0
    %v1447 = vlog2.pop %v1446
    %v1448 = vmul.f32 %v1447, 0.6931472
    %v1449 = vmul.f32 -0.5, %v582
    %v1450 = vadd.f32 %v1449, 1.0
    %v1451 = vmul.f32 %v1450, %v582
    %v1452 = vand.u32 2147483647, %v582
    %vm1453 = vcmp.lt.f32.partialorder %v1452, 0.0004427343
    %v1454 = vsel %vm1453, %v1451, %v1448
    %v1455 = vadd.f32 %v584, 1.0
    %v1456 = vlog2.pop %v1455
    %v1457 = vmul.f32 %v1456, 0.6931472
    %v1458 = vmul.f32 -0.5, %v584
    %v1459 = vadd.f32 %v1458, 1.0
    %v1460 = vmul.f32 %v1459, %v584
    %v1461 = vand.u32 2147483647, %v584
    %vm1462 = vcmp.lt.f32.partialorder %v1461, 0.0004427343
    %v1463 = vsel %vm1462, %v1460, %v1457
    %v1464 = vadd.f32 %v586, 1.0
    %v1465 = vlog2.pop %v1464
    %v1466 = vmul.f32 %v1465, 0.6931472
    %v1467 = vmul.f32 -0.5, %v586
    %v1468 = vadd.f32 %v1467, 1.0
    %v1469 = vmul.f32 %v1468, %v586
    %v1470 = vand.u32 2147483647, %v586
    %vm1471 = vcmp.lt.f32.partialorder %v1470, 0.0004427343
    %v1472 = vsel %vm1471, %v1469, %v1466
    %v1473 = vadd.f32 %v588, 1.0
    %v1474 = vlog2.pop %v1473
    %v1475 = vmul.f32 %v1474, 0.6931472
    %v1476 = vmul.f32 -0.5, %v588
    %v1477 = vadd.f32 %v1476, 1.0
    %v1478 = vmul.f32 %v1477, %v588
    %v1479 = vand.u32 2147483647, %v588
    %vm1480 = vcmp.lt.f32.partialorder %v1479, 0.0004427343
    %v1481 = vsel %vm1480, %v1478, %v1475
    %v1482 = vadd.f32 %v590, 1.0
    %v1483 = vlog2.pop %v1482
    %v1484 = vmul.f32 %v1483, 0.6931472
    %v1485 = vmul.f32 -0.5, %v590
    %v1486 = vadd.f32 %v1485, 1.0
    %v1487 = vmul.f32 %v1486, %v590
    %v1488 = vand.u32 2147483647, %v590
    %vm1489 = vcmp.lt.f32.partialorder %v1488, 0.0004427343
    %v1490 = vsel %vm1489, %v1487, %v1484
    %v1491 = vadd.f32 %v592, 1.0
    %v1492 = vlog2.pop %v1491
    %v1493 = vmul.f32 %v1492, 0.6931472
    %v1494 = vmul.f32 -0.5, %v592
    %v1495 = vadd.f32 %v1494, 1.0
    %v1496 = vmul.f32 %v1495, %v592
    %v1497 = vand.u32 2147483647, %v592
    %vm1498 = vcmp.lt.f32.partialorder %v1497, 0.0004427343
    %v1499 = vsel %vm1498, %v1496, %v1493
    %v1500 = vadd.f32 %v594, 1.0
    %v1501 = vlog2.pop %v1500
    %v1502 = vmul.f32 %v1501, 0.6931472
    %v1503 = vmul.f32 -0.5, %v594
    %v1504 = vadd.f32 %v1503, 1.0
    %v1505 = vmul.f32 %v1504, %v594
    %v1506 = vand.u32 2147483647, %v594
    %vm1507 = vcmp.lt.f32.partialorder %v1506, 0.0004427343
    %v1508 = vsel %vm1507, %v1505, %v1502
    %v1509 = vadd.f32 %v596, 1.0
    %v1510 = vlog2.pop %v1509
    %v1511 = vmul.f32 %v1510, 0.6931472
    %v1512 = vmul.f32 -0.5, %v596
    %v1513 = vadd.f32 %v1512, 1.0
    %v1514 = vmul.f32 %v1513, %v596
    %v1515 = vand.u32 2147483647, %v596
    %vm1516 = vcmp.lt.f32.partialorder %v1515, 0.0004427343
    %v1517 = vsel %vm1516, %v1514, %v1511
    %v1518 = vadd.f32 %v598, 1.0
    %v1519 = vlog2.pop %v1518
    %v1520 = vmul.f32 %v1519, 0.6931472
    %v1521 = vmul.f32 -0.5, %v598
    %v1522 = vadd.f32 %v1521, 1.0
    %v1523 = vmul.f32 %v1522, %v598
    %v1524 = vand.u32 2147483647, %v598
    %vm1525 = vcmp.lt.f32.partialorder %v1524, 0.0004427343
    %v1526 = vsel %vm1525, %v1523, %v1520
    %v1527 = vadd.f32 %v600, 1.0
    %v1528 = vlog2.pop %v1527
    %v1529 = vmul.f32 %v1528, 0.6931472
    %v1530 = vmul.f32 -0.5, %v600
    %v1531 = vadd.f32 %v1530, 1.0
    %v1532 = vmul.f32 %v1531, %v600
    %v1533 = vand.u32 2147483647, %v600
    %vm1534 = vcmp.lt.f32.partialorder %v1533, 0.0004427343
    %v1535 = vsel %vm1534, %v1532, %v1529
    %v1536 = vadd.f32 %v602, 1.0
    %v1537 = vlog2.pop %v1536
    %v1538 = vmul.f32 %v1537, 0.6931472
    %v1539 = vmul.f32 -0.5, %v602
    %v1540 = vadd.f32 %v1539, 1.0
    %v1541 = vmul.f32 %v1540, %v602
    %v1542 = vand.u32 2147483647, %v602
    %vm1543 = vcmp.lt.f32.partialorder %v1542, 0.0004427343
    %v1544 = vsel %vm1543, %v1541, %v1538
    %v1545 = vadd.f32 %v604, 1.0
    %v1546 = vlog2.pop %v1545
    %v1547 = vmul.f32 %v1546, 0.6931472
    %v1548 = vmul.f32 -0.5, %v604
    %v1549 = vadd.f32 %v1548, 1.0
    %v1550 = vmul.f32 %v1549, %v604
    %v1551 = vand.u32 2147483647, %v604
    %vm1552 = vcmp.lt.f32.partialorder %v1551, 0.0004427343
    %v1553 = vsel %vm1552, %v1550, %v1547
    %v1554 = vadd.f32 %v606, 1.0
    %v1555 = vlog2.pop %v1554
    %v1556 = vmul.f32 %v1555, 0.6931472
    %v1557 = vmul.f32 -0.5, %v606
    %v1558 = vadd.f32 %v1557, 1.0
    %v1559 = vmul.f32 %v1558, %v606
    %v1560 = vand.u32 2147483647, %v606
    %vm1561 = vcmp.lt.f32.partialorder %v1560, 0.0004427343
    %v1562 = vsel %vm1561, %v1559, %v1556
    %v1563 = vadd.f32 %v608, 1.0
    %v1564 = vlog2.pop %v1563
    %v1565 = vmul.f32 %v1564, 0.6931472
    %v1566 = vmul.f32 -0.5, %v608
    %v1567 = vadd.f32 %v1566, 1.0
    %v1568 = vmul.f32 %v1567, %v608
    %v1569 = vand.u32 2147483647, %v608
    %vm1570 = vcmp.lt.f32.partialorder %v1569, 0.0004427343
    %v1571 = vsel %vm1570, %v1568, %v1565
    %v1572 = vadd.f32 %v610, 1.0
    %v1573 = vlog2.pop %v1572
    %v1574 = vmul.f32 %v1573, 0.6931472
    %v1575 = vmul.f32 -0.5, %v610
    %v1576 = vadd.f32 %v1575, 1.0
    %v1577 = vmul.f32 %v1576, %v610
    %v1578 = vand.u32 2147483647, %v610
    %vm1579 = vcmp.lt.f32.partialorder %v1578, 0.0004427343
    %v1580 = vsel %vm1579, %v1577, %v1574
    %v1581 = vadd.f32 %v612, 1.0
    %v1582 = vlog2.pop %v1581
    %v1583 = vmul.f32 %v1582, 0.6931472
    %v1584 = vmul.f32 -0.5, %v612
    %v1585 = vadd.f32 %v1584, 1.0
    %v1586 = vmul.f32 %v1585, %v612
    %v1587 = vand.u32 2147483647, %v612
    %vm1588 = vcmp.lt.f32.partialorder %v1587, 0.0004427343
    %v1589 = vsel %vm1588, %v1586, %v1583
    %v1590 = vadd.f32 %v614, 1.0
    %v1591 = vlog2.pop %v1590
    %v1592 = vmul.f32 %v1591, 0.6931472
    %v1593 = vmul.f32 -0.5, %v614
    %v1594 = vadd.f32 %v1593, 1.0
    %v1595 = vmul.f32 %v1594, %v614
    %v1596 = vand.u32 2147483647, %v614
    %vm1597 = vcmp.lt.f32.partialorder %v1596, 0.0004427343
    %v1598 = vsel %vm1597, %v1595, %v1592
    %v1599 = vadd.f32 %v616, 1.0
    %v1600 = vlog2.pop %v1599
    %v1601 = vmul.f32 %v1600, 0.6931472
    %v1602 = vmul.f32 -0.5, %v616
    %v1603 = vadd.f32 %v1602, 1.0
    %v1604 = vmul.f32 %v1603, %v616
    %v1605 = vand.u32 2147483647, %v616
    %vm1606 = vcmp.lt.f32.partialorder %v1605, 0.0004427343
    %v1607 = vsel %vm1606, %v1604, %v1601
    %v1608 = vadd.f32 %v618, 1.0
    %v1609 = vlog2.pop %v1608
    %v1610 = vmul.f32 %v1609, 0.6931472
    %v1611 = vmul.f32 -0.5, %v618
    %v1612 = vadd.f32 %v1611, 1.0
    %v1613 = vmul.f32 %v1612, %v618
    %v1614 = vand.u32 2147483647, %v618
    %vm1615 = vcmp.lt.f32.partialorder %v1614, 0.0004427343
    %v1616 = vsel %vm1615, %v1613, %v1610
    %v1617 = vadd.f32 %v620, 1.0
    %v1618 = vlog2.pop %v1617
    %v1619 = vmul.f32 %v1618, 0.6931472
    %v1620 = vmul.f32 -0.5, %v620
    %v1621 = vadd.f32 %v1620, 1.0
    %v1622 = vmul.f32 %v1621, %v620
    %v1623 = vand.u32 2147483647, %v620
    %vm1624 = vcmp.lt.f32.partialorder %v1623, 0.0004427343
    %v1625 = vsel %vm1624, %v1622, %v1619
    %v1626 = vadd.f32 %v622, 1.0
    %v1627 = vlog2.pop %v1626
    %v1628 = vmul.f32 %v1627, 0.6931472
    %v1629 = vmul.f32 -0.5, %v622
    %v1630 = vadd.f32 %v1629, 1.0
    %v1631 = vmul.f32 %v1630, %v622
    %v1632 = vand.u32 2147483647, %v622
    %vm1633 = vcmp.lt.f32.partialorder %v1632, 0.0004427343
    %v1634 = vsel %vm1633, %v1631, %v1628
    %v1635 = vadd.f32 %v624, 1.0
    %v1636 = vlog2.pop %v1635
    %v1637 = vmul.f32 %v1636, 0.6931472
    %v1638 = vmul.f32 -0.5, %v624
    %v1639 = vadd.f32 %v1638, 1.0
    %v1640 = vmul.f32 %v1639, %v624
    %v1641 = vand.u32 2147483647, %v624
    %vm1642 = vcmp.lt.f32.partialorder %v1641, 0.0004427343
    %v1643 = vsel %vm1642, %v1640, %v1637
    %v1644 = vadd.f32 %v626, 1.0
    %v1645 = vlog2.pop %v1644
    %v1646 = vmul.f32 %v1645, 0.6931472
    %v1647 = vmul.f32 -0.5, %v626
    %v1648 = vadd.f32 %v1647, 1.0
    %v1649 = vmul.f32 %v1648, %v626
    %v1650 = vand.u32 2147483647, %v626
    %vm1651 = vcmp.lt.f32.partialorder %v1650, 0.0004427343
    %v1652 = vsel %vm1651, %v1649, %v1646
    %v1653 = vadd.f32 %v628, 1.0
    %v1654 = vlog2.pop %v1653
    %v1655 = vmul.f32 %v1654, 0.6931472
    %v1656 = vmul.f32 -0.5, %v628
    %v1657 = vadd.f32 %v1656, 1.0
    %v1658 = vmul.f32 %v1657, %v628
    %v1659 = vand.u32 2147483647, %v628
    %vm1660 = vcmp.lt.f32.partialorder %v1659, 0.0004427343
    %v1661 = vsel %vm1660, %v1658, %v1655
    %v1662 = vadd.f32 %v630, 1.0
    %v1663 = vlog2.pop %v1662
    %v1664 = vmul.f32 %v1663, 0.6931472
    %v1665 = vmul.f32 -0.5, %v630
    %v1666 = vadd.f32 %v1665, 1.0
    %v1667 = vmul.f32 %v1666, %v630
    %v1668 = vand.u32 2147483647, %v630
    %vm1669 = vcmp.lt.f32.partialorder %v1668, 0.0004427343
    %v1670 = vsel %vm1669, %v1667, %v1664
    %v1671 = vadd.f32 %v632, 1.0
    %v1672 = vlog2.pop %v1671
    %v1673 = vmul.f32 %v1672, 0.6931472
    %v1674 = vmul.f32 -0.5, %v632
    %v1675 = vadd.f32 %v1674, 1.0
    %v1676 = vmul.f32 %v1675, %v632
    %v1677 = vand.u32 2147483647, %v632
    %vm1678 = vcmp.lt.f32.partialorder %v1677, 0.0004427343
    %v1679 = vsel %vm1678, %v1676, %v1673
    %v1680 = vadd.f32 %v634, 1.0
    %v1681 = vlog2.pop %v1680
    %v1682 = vmul.f32 %v1681, 0.6931472
    %v1683 = vmul.f32 -0.5, %v634
    %v1684 = vadd.f32 %v1683, 1.0
    %v1685 = vmul.f32 %v1684, %v634
    %v1686 = vand.u32 2147483647, %v634
    %vm1687 = vcmp.lt.f32.partialorder %v1686, 0.0004427343
    %v1688 = vsel %vm1687, %v1685, %v1682
    %v1689 = vadd.f32 %v636, 1.0
    %v1690 = vlog2.pop %v1689
    %v1691 = vmul.f32 %v1690, 0.6931472
    %v1692 = vmul.f32 -0.5, %v636
    %v1693 = vadd.f32 %v1692, 1.0
    %v1694 = vmul.f32 %v1693, %v636
    %v1695 = vand.u32 2147483647, %v636
    %vm1696 = vcmp.lt.f32.partialorder %v1695, 0.0004427343
    %v1697 = vsel %vm1696, %v1694, %v1691
    %v1698 = vadd.f32 %v638, 1.0
    %v1699 = vlog2.pop %v1698
    %v1700 = vmul.f32 %v1699, 0.6931472
    %v1701 = vmul.f32 -0.5, %v638
    %v1702 = vadd.f32 %v1701, 1.0
    %v1703 = vmul.f32 %v1702, %v638
    %v1704 = vand.u32 2147483647, %v638
    %vm1705 = vcmp.lt.f32.partialorder %v1704, 0.0004427343
    %v1706 = vsel %vm1705, %v1703, %v1700
    %v1707 = vadd.f32 %v640, 1.0
    %v1708 = vlog2.pop %v1707
    %v1709 = vmul.f32 %v1708, 0.6931472
    %v1710 = vmul.f32 -0.5, %v640
    %v1711 = vadd.f32 %v1710, 1.0
    %v1712 = vmul.f32 %v1711, %v640
    %v1713 = vand.u32 2147483647, %v640
    %vm1714 = vcmp.lt.f32.partialorder %v1713, 0.0004427343
    %v1715 = vsel %vm1714, %v1712, %v1709
    %v1716 = vadd.f32 %v642, 1.0
    %v1717 = vlog2.pop %v1716
    %v1718 = vmul.f32 %v1717, 0.6931472
    %v1719 = vmul.f32 -0.5, %v642
    %v1720 = vadd.f32 %v1719, 1.0
    %v1721 = vmul.f32 %v1720, %v642
    %v1722 = vand.u32 2147483647, %v642
    %vm1723 = vcmp.lt.f32.partialorder %v1722, 0.0004427343
    %v1724 = vsel %vm1723, %v1721, %v1718
    %v1725 = vadd.f32 %v644, 1.0
    %v1726 = vlog2.pop %v1725
    %v1727 = vmul.f32 %v1726, 0.6931472
    %v1728 = vmul.f32 -0.5, %v644
    %v1729 = vadd.f32 %v1728, 1.0
    %v1730 = vmul.f32 %v1729, %v644
    %v1731 = vand.u32 2147483647, %v644
    %vm1732 = vcmp.lt.f32.partialorder %v1731, 0.0004427343
    %v1733 = vsel %vm1732, %v1730, %v1727
    %v1734 = vadd.f32 %v646, 1.0
    %v1735 = vlog2.pop %v1734
    %v1736 = vmul.f32 %v1735, 0.6931472
    %v1737 = vmul.f32 -0.5, %v646
    %v1738 = vadd.f32 %v1737, 1.0
    %v1739 = vmul.f32 %v1738, %v646
    %v1740 = vand.u32 2147483647, %v646
    %vm1741 = vcmp.lt.f32.partialorder %v1740, 0.0004427343
    %v1742 = vsel %vm1741, %v1739, %v1736
    %v1743 = vadd.f32 %v648, 1.0
    %v1744 = vlog2.pop %v1743
    %v1745 = vmul.f32 %v1744, 0.6931472
    %v1746 = vmul.f32 -0.5, %v648
    %v1747 = vadd.f32 %v1746, 1.0
    %v1748 = vmul.f32 %v1747, %v648
    %v1749 = vand.u32 2147483647, %v648
    %vm1750 = vcmp.lt.f32.partialorder %v1749, 0.0004427343
    %v1751 = vsel %vm1750, %v1748, %v1745
    %v1752 = vadd.f32 %v650, 1.0
    %v1753 = vlog2.pop %v1752
    %v1754 = vmul.f32 %v1753, 0.6931472
    %v1755 = vmul.f32 -0.5, %v650
    %v1756 = vadd.f32 %v1755, 1.0
    %v1757 = vmul.f32 %v1756, %v650
    %v1758 = vand.u32 2147483647, %v650
    %vm1759 = vcmp.lt.f32.partialorder %v1758, 0.0004427343
    %v1760 = vsel %vm1759, %v1757, %v1754
    %v1761 = vadd.f32 %v652, 1.0
    %v1762 = vlog2.pop %v1761
    %v1763 = vmul.f32 %v1762, 0.6931472
    %v1764 = vmul.f32 -0.5, %v652
    %v1765 = vadd.f32 %v1764, 1.0
    %v1766 = vmul.f32 %v1765, %v652
    %v1767 = vand.u32 2147483647, %v652
    %vm1768 = vcmp.lt.f32.partialorder %v1767, 0.0004427343
    %v1769 = vsel %vm1768, %v1766, %v1763
    %v1770 = vadd.f32 %v654, 1.0
    %v1771 = vlog2.pop %v1770
    %v1772 = vmul.f32 %v1771, 0.6931472
    %v1773 = vmul.f32 -0.5, %v654
    %v1774 = vadd.f32 %v1773, 1.0
    %v1775 = vmul.f32 %v1774, %v654
    %v1776 = vand.u32 2147483647, %v654
    %vm1777 = vcmp.lt.f32.partialorder %v1776, 0.0004427343
    %v1778 = vsel %vm1777, %v1775, %v1772
    %v1779 = vadd.f32 %v656, 1.0
    %v1780 = vlog2.pop %v1779
    %v1781 = vmul.f32 %v1780, 0.6931472
    %v1782 = vmul.f32 -0.5, %v656
    %v1783 = vadd.f32 %v1782, 1.0
    %v1784 = vmul.f32 %v1783, %v656
    %v1785 = vand.u32 2147483647, %v656
    %vm1786 = vcmp.lt.f32.partialorder %v1785, 0.0004427343
    %v1787 = vsel %vm1786, %v1784, %v1781
    %v1788 = vadd.f32 %v658, 1.0
    %v1789 = vlog2.pop %v1788
    %v1790 = vmul.f32 %v1789, 0.6931472
    %v1791 = vmul.f32 -0.5, %v658
    %v1792 = vadd.f32 %v1791, 1.0
    %v1793 = vmul.f32 %v1792, %v658
    %v1794 = vand.u32 2147483647, %v658
    %vm1795 = vcmp.lt.f32.partialorder %v1794, 0.0004427343
    %v1796 = vsel %vm1795, %v1793, %v1790
    %v1797 = vadd.f32 %v660, 1.0
    %v1798 = vlog2.pop %v1797
    %v1799 = vmul.f32 %v1798, 0.6931472
    %v1800 = vmul.f32 -0.5, %v660
    %v1801 = vadd.f32 %v1800, 1.0
    %v1802 = vmul.f32 %v1801, %v660
    %v1803 = vand.u32 2147483647, %v660
    %vm1804 = vcmp.lt.f32.partialorder %v1803, 0.0004427343
    %v1805 = vsel %vm1804, %v1802, %v1799
    %v1806 = vadd.f32 %v662, 1.0
    %v1807 = vlog2.pop %v1806
    %v1808 = vmul.f32 %v1807, 0.6931472
    %v1809 = vmul.f32 -0.5, %v662
    %v1810 = vadd.f32 %v1809, 1.0
    %v1811 = vmul.f32 %v1810, %v662
    %v1812 = vand.u32 2147483647, %v662
    %vm1813 = vcmp.lt.f32.partialorder %v1812, 0.0004427343
    %v1814 = vsel %vm1813, %v1811, %v1808
    %v1815 = vsel %vm151, %v23, %v671
    %v1816 = vsel %vm152, %v24, %v680
    %v1817 = vsel %vm153, %v25, %v689
    %v1818 = vsel %vm154, %v26, %v698
    %v1819 = vsel %vm155, %v27, %v707
    %v1820 = vsel %vm156, %v28, %v716
    %v1821 = vsel %vm157, %v29, %v725
    %v1822 = vsel %vm158, %v30, %v734
    %v1823 = vsel %vm159, %v31, %v743
    %v1824 = vsel %vm160, %v32, %v752
    %v1825 = vsel %vm161, %v33, %v761
    %v1826 = vsel %vm162, %v34, %v770
    %v1827 = vsel %vm163, %v35, %v779
    %v1828 = vsel %vm164, %v36, %v788
    %v1829 = vsel %vm165, %v37, %v797
    %v1830 = vsel %vm166, %v38, %v806
    %v1831 = vsel %vm167, %v39, %v815
    %v1832 = vsel %vm168, %v40, %v824
    %v1833 = vsel %vm169, %v41, %v833
    %v1834 = vsel %vm170, %v42, %v842
    %v1835 = vsel %vm171, %v43, %v851
    %v1836 = vsel %vm172, %v44, %v860
    %v1837 = vsel %vm173, %v45, %v869
    %v1838 = vsel %vm174, %v46, %v878
    %v1839 = vsel %vm175, %v47, %v887
    %v1840 = vsel %vm176, %v48, %v896
    %v1841 = vsel %vm177, %v49, %v905
    %v1842 = vsel %vm178, %v50, %v914
    %v1843 = vsel %vm179, %v51, %v923
    %v1844 = vsel %vm180, %v52, %v932
    %v1845 = vsel %vm181, %v53, %v941
    %v1846 = vsel %vm182, %v54, %v950
    %v1847 = vsel %vm183, %v55, %v959
    %v1848 = vsel %vm184, %v56, %v968
    %v1849 = vsel %vm185, %v57, %v977
    %v1850 = vsel %vm186, %v58, %v986
    %v1851 = vsel %vm187, %v59, %v995
    %v1852 = vsel %vm188, %v60, %v1004
    %v1853 = vsel %vm189, %v61, %v1013
    %v1854 = vsel %vm190, %v62, %v1022
    %v1855 = vsel %vm191, %v63, %v1031
    %v1856 = vsel %vm192, %v64, %v1040
    %v1857 = vsel %vm193, %v65, %v1049
    %v1858 = vsel %vm194, %v66, %v1058
    %v1859 = vsel %vm195, %v67, %v1067
    %v1860 = vsel %vm196, %v68, %v1076
    %v1861 = vsel %vm197, %v69, %v1085
    %v1862 = vsel %vm198, %v70, %v1094
    %v1863 = vsel %vm199, %v71, %v1103
    %v1864 = vsel %vm200, %v72, %v1112
    %v1865 = vsel %vm201, %v73, %v1121
    %v1866 = vsel %vm202, %v74, %v1130
    %v1867 = vsel %vm203, %v75, %v1139
    %v1868 = vsel %vm204, %v76, %v1148
    %v1869 = vsel %vm205, %v77, %v1157
    %v1870 = vsel %vm206, %v78, %v1166
    %v1871 = vsel %vm207, %v79, %v1175
    %v1872 = vsel %vm208, %v80, %v1184
    %v1873 = vsel %vm209, %v81, %v1193
    %v1874 = vsel %vm210, %v82, %v1202
    %v1875 = vsel %vm211, %v83, %v1211
    %v1876 = vsel %vm212, %v84, %v1220
    %v1877 = vsel %vm213, %v85, %v1229
    %v1878 = vsel %vm214, %v86, %v1238
    %v1879 = vsel %vm215, %v87, %v1247
    %v1880 = vsel %vm216, %v88, %v1256
    %v1881 = vsel %vm217, %v89, %v1265
    %v1882 = vsel %vm218, %v90, %v1274
    %v1883 = vsel %vm219, %v91, %v1283
    %v1884 = vsel %vm220, %v92, %v1292
    %v1885 = vsel %vm221, %v93, %v1301
    %v1886 = vsel %vm222, %v94, %v1310
    %v1887 = vsel %vm223, %v95, %v1319
    %v1888 = vsel %vm224, %v96, %v1328
    %v1889 = vsel %vm225, %v97, %v1337
    %v1890 = vsel %vm226, %v98, %v1346
    %v1891 = vsel %vm227, %v99, %v1355
    %v1892 = vsel %vm228, %v100, %v1364
    %v1893 = vsel %vm229, %v101, %v1373
    %v1894 = vsel %vm230, %v102, %v1382
    %v1895 = vsel %vm231, %v103, %v1391
    %v1896 = vsel %vm232, %v104, %v1400
    %v1897 = vsel %vm233, %v105, %v1409
    %v1898 = vsel %vm234, %v106, %v1418
    %v1899 = vsel %vm235, %v107, %v1427
    %v1900 = vsel %vm236, %v108, %v1436
    %v1901 = vsel %vm237, %v109, %v1445
    %v1902 = vsel %vm238, %v110, %v1454
    %v1903 = vsel %vm239, %v111, %v1463
    %v1904 = vsel %vm240, %v112, %v1472
    %v1905 = vsel %vm241, %v113, %v1481
    %v1906 = vsel %vm242, %v114, %v1490
    %v1907 = vsel %vm243, %v115, %v1499
    %v1908 = vsel %vm244, %v116, %v1508
    %v1909 = vsel %vm245, %v117, %v1517
    %v1910 = vsel %vm246, %v118, %v1526
    %v1911 = vsel %vm247, %v119, %v1535
    %v1912 = vsel %vm248, %v120, %v1544
    %v1913 = vsel %vm249, %v121, %v1553
    %v1914 = vsel %vm250, %v122, %v1562
    %v1915 = vsel %vm251, %v123, %v1571
    %v1916 = vsel %vm252, %v124, %v1580
    %v1917 = vsel %vm253, %v125, %v1589
    %v1918 = vsel %vm254, %v126, %v1598
    %v1919 = vsel %vm255, %v127, %v1607
    %v1920 = vsel %vm256, %v128, %v1616
    %v1921 = vsel %vm257, %v129, %v1625
    %v1922 = vsel %vm258, %v130, %v1634
    %v1923 = vsel %vm259, %v131, %v1643
    %v1924 = vsel %vm260, %v132, %v1652
    %v1925 = vsel %vm261, %v133, %v1661
    %v1926 = vsel %vm262, %v134, %v1670
    %v1927 = vsel %vm263, %v135, %v1679
    %v1928 = vsel %vm264, %v136, %v1688
    %v1929 = vsel %vm265, %v137, %v1697
    %v1930 = vsel %vm266, %v138, %v1706
    %v1931 = vsel %vm267, %v139, %v1715
    %v1932 = vsel %vm268, %v140, %v1724
    %v1933 = vsel %vm269, %v141, %v1733
    %v1934 = vsel %vm270, %v142, %v1742
    %v1935 = vsel %vm271, %v143, %v1751
    %v1936 = vsel %vm272, %v144, %v1760
    %v1937 = vsel %vm273, %v145, %v1769
    %v1938 = vsel %vm274, %v146, %v1778
    %v1939 = vsel %vm275, %v147, %v1787
    %v1940 = vsel %vm276, %v148, %v1796
    %v1941 = vsel %vm277, %v149, %v1805
    %v1942 = vsel %vm278, %v150, %v1814
    %1943 = vst [vmem:[#allocation5] sm:$0xff] %v1815
    %1944 = vst [vmem:[#allocation5 + $0x8] sm:$0xff] %v1816
    %1945 = vst [vmem:[#allocation5 + $0x10] sm:$0xff] %v1817
    %1946 = vst [vmem:[#allocation5 + $0x18] sm:$0xff] %v1818
    %1947 = vst [vmem:[#allocation5 + $0x20] sm:$0xff] %v1819
    %1948 = vst [vmem:[#allocation5 + $0x28] sm:$0xff] %v1820
    %1949 = vst [vmem:[#allocation5 + $0x30] sm:$0xff] %v1821
    %1950 = vst [vmem:[#allocation5 + $0x38] sm:$0xff] %v1822
    %1951 = vst [vmem:[#allocation5 + $0x40] sm:$0xff] %v1823
    %1952 = vst [vmem:[#allocation5 + $0x48] sm:$0xff] %v1824
    %1953 = vst [vmem:[#allocation5 + $0x50] sm:$0xff] %v1825
    %1954 = vst [vmem:[#allocation5 + $0x58] sm:$0xff] %v1826
    %1955 = vst [vmem:[#allocation5 + $0x60] sm:$0xff] %v1827
    %1956 = vst [vmem:[#allocation5 + $0x68] sm:$0xff] %v1828
    %1957 = vst [vmem:[#allocation5 + $0x70] sm:$0xff] %v1829
    %1958 = vst [vmem:[#allocation5 + $0x78] sm:$0xff] %v1830
    %1959 = vst [vmem:[#allocation5 + $0x80] sm:$0xff] %v1831
    %1960 = vst [vmem:[#allocation5 + $0x88] sm:$0xff] %v1832
    %1961 = vst [vmem:[#allocation5 + $0x90] sm:$0xff] %v1833
    %1962 = vst [vmem:[#allocation5 + $0x98] sm:$0xff] %v1834
    %1963 = vst [vmem:[#allocation5 + $0xa0] sm:$0xff] %v1835
    %1964 = vst [vmem:[#allocation5 + $0xa8] sm:$0xff] %v1836
    %1965 = vst [vmem:[#allocation5 + $0xb0] sm:$0xff] %v1837
    %1966 = vst [vmem:[#allocation5 + $0xb8] sm:$0xff] %v1838
    %1967 = vst [vmem:[#allocation5 + $0xc0] sm:$0xff] %v1839
    %1968 = vst [vmem:[#allocation5 + $0xc8] sm:$0xff] %v1840
    %1969 = vst [vmem:[#allocation5 + $0xd0] sm:$0xff] %v1841
    %1970 = vst [vmem:[#allocation5 + $0xd8] sm:$0xff] %v1842
    %1971 = vst [vmem:[#allocation5 + $0xe0] sm:$0xff] %v1843
    %1972 = vst [vmem:[#allocation5 + $0xe8] sm:$0xff] %v1844
    %1973 = vst [vmem:[#allocation5 + $0xf0] sm:$0xff] %v1845
    %1974 = vst [vmem:[#allocation5 + $0xf8] sm:$0xff] %v1846
    %1975 = vst [vmem:[#allocation5 + $0x100] sm:$0xff] %v1847
    %1976 = vst [vmem:[#allocation5 + $0x108] sm:$0xff] %v1848
    %1977 = vst [vmem:[#allocation5 + $0x110] sm:$0xff] %v1849
    %1978 = vst [vmem:[#allocation5 + $0x118] sm:$0xff] %v1850
    %1979 = vst [vmem:[#allocation5 + $0x120] sm:$0xff] %v1851
    %1980 = vst [vmem:[#allocation5 + $0x128] sm:$0xff] %v1852
    %1981 = vst [vmem:[#allocation5 + $0x130] sm:$0xff] %v1853
    %1982 = vst [vmem:[#allocation5 + $0x138] sm:$0xff] %v1854
    %1983 = vst [vmem:[#allocation5 + $0x140] sm:$0xff] %v1855
    %1984 = vst [vmem:[#allocation5 + $0x148] sm:$0xff] %v1856
    %1985 = vst [vmem:[#allocation5 + $0x150] sm:$0xff] %v1857
    %1986 = vst [vmem:[#allocation5 + $0x158] sm:$0xff] %v1858
    %1987 = vst [vmem:[#allocation5 + $0x160] sm:$0xff] %v1859
    %1988 = vst [vmem:[#allocation5 + $0x168] sm:$0xff] %v1860
    %1989 = vst [vmem:[#allocation5 + $0x170] sm:$0xff] %v1861
    %1990 = vst [vmem:[#allocation5 + $0x178] sm:$0xff] %v1862
    %1991 = vst [vmem:[#allocation5 + $0x180] sm:$0xff] %v1863
    %1992 = vst [vmem:[#allocation5 + $0x188] sm:$0xff] %v1864
    %1993 = vst [vmem:[#allocation5 + $0x190] sm:$0xff] %v1865
    %1994 = vst [vmem:[#allocation5 + $0x198] sm:$0xff] %v1866
    %1995 = vst [vmem:[#allocation5 + $0x1a0] sm:$0xff] %v1867
    %1996 = vst [vmem:[#allocation5 + $0x1a8] sm:$0xff] %v1868
    %1997 = vst [vmem:[#allocation5 + $0x1b0] sm:$0xff] %v1869
    %1998 = vst [vmem:[#allocation5 + $0x1b8] sm:$0xff] %v1870
    %1999 = vst [vmem:[#allocation5 + $0x1c0] sm:$0xff] %v1871
    %2000 = vst [vmem:[#allocation5 + $0x1c8] sm:$0xff] %v1872
    %2001 = vst [vmem:[#allocation5 + $0x1d0] sm:$0xff] %v1873
    %2002 = vst [vmem:[#allocation5 + $0x1d8] sm:$0xff] %v1874
    %2003 = vst [vmem:[#allocation5 + $0x1e0] sm:$0xff] %v1875
    %2004 = vst [vmem:[#allocation5 + $0x1e8] sm:$0xff] %v1876
    %2005 = vst [vmem:[#allocation5 + $0x1f0] sm:$0xff] %v1877
    %2006 = vst [vmem:[#allocation5 + $0x1f8] sm:$0xff] %v1878
    %2007 = vst [vmem:[#allocation5 + $0x200] sm:$0xff] %v1879
    %2008 = vst [vmem:[#allocation5 + $0x208] sm:$0xff] %v1880
    %2009 = vst [vmem:[#allocation5 + $0x210] sm:$0xff] %v1881
    %2010 = vst [vmem:[#allocation5 + $0x218] sm:$0xff] %v1882
    %2011 = vst [vmem:[#allocation5 + $0x220] sm:$0xff] %v1883
    %2012 = vst [vmem:[#allocation5 + $0x228] sm:$0xff] %v1884
    %2013 = vst [vmem:[#allocation5 + $0x230] sm:$0xff] %v1885
    %2014 = vst [vmem:[#allocation5 + $0x238] sm:$0xff] %v1886
    %2015 = vst [vmem:[#allocation5 + $0x240] sm:$0xff] %v1887
    %2016 = vst [vmem:[#allocation5 + $0x248] sm:$0xff] %v1888
    %2017 = vst [vmem:[#allocation5 + $0x250] sm:$0xff] %v1889
    %2018 = vst [vmem:[#allocation5 + $0x258] sm:$0xff] %v1890
    %2019 = vst [vmem:[#allocation5 + $0x260] sm:$0xff] %v1891
    %2020 = vst [vmem:[#allocation5 + $0x268] sm:$0xff] %v1892
    %2021 = vst [vmem:[#allocation5 + $0x270] sm:$0xff] %v1893
    %2022 = vst [vmem:[#allocation5 + $0x278] sm:$0xff] %v1894
    %2023 = vst [vmem:[#allocation5 + $0x280] sm:$0xff] %v1895
    %2024 = vst [vmem:[#allocation5 + $0x288] sm:$0xff] %v1896
    %2025 = vst [vmem:[#allocation5 + $0x290] sm:$0xff] %v1897
    %2026 = vst [vmem:[#allocation5 + $0x298] sm:$0xff] %v1898
    %2027 = vst [vmem:[#allocation5 + $0x2a0] sm:$0xff] %v1899
    %2028 = vst [vmem:[#allocation5 + $0x2a8] sm:$0xff] %v1900
    %2029 = vst [vmem:[#allocation5 + $0x2b0] sm:$0xff] %v1901
    %2030 = vst [vmem:[#allocation5 + $0x2b8] sm:$0xff] %v1902
    %2031 = vst [vmem:[#allocation5 + $0x2c0] sm:$0xff] %v1903
    %2032 = vst [vmem:[#allocation5 + $0x2c8] sm:$0xff] %v1904
    %2033 = vst [vmem:[#allocation5 + $0x2d0] sm:$0xff] %v1905
    %2034 = vst [vmem:[#allocation5 + $0x2d8] sm:$0xff] %v1906
    %2035 = vst [vmem:[#allocation5 + $0x2e0] sm:$0xff] %v1907
    %2036 = vst [vmem:[#allocation5 + $0x2e8] sm:$0xff] %v1908
    %2037 = vst [vmem:[#allocation5 + $0x2f0] sm:$0xff] %v1909
    %2038 = vst [vmem:[#allocation5 + $0x2f8] sm:$0xff] %v1910
    %2039 = vst [vmem:[#allocation5 + $0x300] sm:$0xff] %v1911
    %2040 = vst [vmem:[#allocation5 + $0x308] sm:$0xff] %v1912
    %2041 = vst [vmem:[#allocation5 + $0x310] sm:$0xff] %v1913
    %2042 = vst [vmem:[#allocation5 + $0x318] sm:$0xff] %v1914
    %2043 = vst [vmem:[#allocation5 + $0x320] sm:$0xff] %v1915
    %2044 = vst [vmem:[#allocation5 + $0x328] sm:$0xff] %v1916
    %2045 = vst [vmem:[#allocation5 + $0x330] sm:$0xff] %v1917
    %2046 = vst [vmem:[#allocation5 + $0x338] sm:$0xff] %v1918
    %2047 = vst [vmem:[#allocation5 + $0x340] sm:$0xff] %v1919
    %2048 = vst [vmem:[#allocation5 + $0x348] sm:$0xff] %v1920
    %2049 = vst [vmem:[#allocation5 + $0x350] sm:$0xff] %v1921
    %2050 = vst [vmem:[#allocation5 + $0x358] sm:$0xff] %v1922
    %2051 = vst [vmem:[#allocation5 + $0x360] sm:$0xff] %v1923
    %2052 = vst [vmem:[#allocation5 + $0x368] sm:$0xff] %v1924
    %2053 = vst [vmem:[#allocation5 + $0x370] sm:$0xff] %v1925
    %2054 = vst [vmem:[#allocation5 + $0x378] sm:$0xff] %v1926
    %2055 = vst [vmem:[#allocation5 + $0x380] sm:$0xff] %v1927
    %2056 = vst [vmem:[#allocation5 + $0x388] sm:$0xff] %v1928
    %2057 = vst [vmem:[#allocation5 + $0x390] sm:$0xff] %v1929
    %2058 = vst [vmem:[#allocation5 + $0x398] sm:$0xff] %v1930
    %2059 = vst [vmem:[#allocation5 + $0x3a0] sm:$0xff] %v1931
    %2060 = vst [vmem:[#allocation5 + $0x3a8] sm:$0xff] %v1932
    %2061 = vst [vmem:[#allocation5 + $0x3b0] sm:$0xff] %v1933
    %2062 = vst [vmem:[#allocation5 + $0x3b8] sm:$0xff] %v1934
    %2063 = vst [vmem:[#allocation5 + $0x3c0] sm:$0xff] %v1935
    %2064 = vst [vmem:[#allocation5 + $0x3c8] sm:$0xff] %v1936
    %2065 = vst [vmem:[#allocation5 + $0x3d0] sm:$0xff] %v1937
    %2066 = vst [vmem:[#allocation5 + $0x3d8] sm:$0xff] %v1938
    %2067 = vst [vmem:[#allocation5 + $0x3e0] sm:$0xff] %v1939
    %2068 = vst [vmem:[#allocation5 + $0x3e8] sm:$0xff] %v1940
    %2069 = vst [vmem:[#allocation5 + $0x3f0] sm:$0xff] %v1941
    %2070 = vst [vmem:[#allocation5 + $0x3f8] sm:$0xff] %v1942
    // Predicated region
    $region10: #{tpu_custom_call.1} parent=1 // pred_check
      _
    $region11: #{tpu_custom_call.1} parent=1 // pred_check_branch
      %2072 = sbr.rel (0) target = $region13
    $region12: #{tpu_custom_call.1} parent=1 // pred_region
      %s2074 = ssub.s32 16384, 16384
      %2075 = vsyncadd [#allocation4], %s2074
      %s2076 = sshll.u32 [#allocation5], 4
      %s2077 = int_to_ptr.vmem [resolvable:$true] %s2076
      %2082 = dma.vmem_to_hbm [thread:$0]  %s2077, 16384, %s1, [#allocation4], 128, 128, 8
    $region13: #{tpu_custom_call.1} parent=1 // pred_fallthru
      _
    // Predicated region
    $region14: #{tpu_custom_call.1} parent=1 // pred_check
      _
    $region15: #{tpu_custom_call.1} parent=1 // pred_check_branch
      %2084 = sbr.rel (0) target = $region17
    $region16: #{tpu_custom_call.1} parent=1 // pred_region
      %2085 = dma.done [#allocation4], 16384
    $region17: #{tpu_custom_call.1} parent=1 // pred_fallthru
      _
    %2086 = vsyncpa [#allocation3], 1
    %2087 = vsyncpa [#allocation4], 1

</llo_original>
